<compile_context>
chip_gen: v7x
topology: tpu7x:2x2x1
jax: 0.10.0
libtpu: 0.0.40
codegen_flags: <defaults>
</compile_context>

<pallas_src>
import math

import numpy as np
import jax
import jax.numpy as jnp
from jax.experimental import pallas as pl
from jax.experimental.pallas import tpu as pltpu

# ----------------------- small, module-consistent shapes -----------------------
B = 2          # batch
TXT_LEN = 8    # text tokens (incl. text [CLS])
N_IMG = 8      # image patch tokens
F_IMG = 48     # image patch feature dim
H = 32         # hidden size
FF = 64        # FFN inner dim
VOCAB = 50     # vocab size
SEQ = TXT_LEN + 1 + N_IMG     # 17
BS = B * SEQ                  # 34 flattened sequence rows
BT = B * TXT_LEN              # 16 flattened text rows
BN = B * N_IMG                # 16 flattened patch rows
ALPHA = 0.4                   # TODO(synk): alpha baked in as compile-time constant
EPS = 1e-5

# ------------------- packed-parameter layout (static offsets) -------------------
# W_ROW: all (H, *) weights, concatenated on the lane axis, 128-aligned starts.
OFF_WQKV = 0            # (H, 3H)  wq|wk|wv
OFF_WO = 128            # (H, H)
OFF_W1 = 256            # (H, FF)
OFF_WHEAD = 384         # (H, 2H)  [head_text.weight.T | head_image.weight.T]
WROW_COLS = 512

# W_COL: all (*, H) weights, concatenated on the sublane axis, 8-aligned starts.
ROW_TOK = 0             # (VOCAB, H)
ROW_POS = 56            # (SEQ, H)
ROW_CLS = 80            # (1, H)   image [CLS] embedding
ROW_IMGP = 88           # (F_IMG, H)
ROW_W2 = 136            # (FF, H)
WCOL_ROWS = 200

# VEC: one small per-feature vector per row (width FF; biases use first H cols).
VROW_BO, VROW_LN1G, VROW_LN1B, VROW_B2 = 0, 1, 2, 3
VROW_LN2G, VROW_LN2B, VROW_BT, VROW_BI = 4, 5, 6, 7
VROW_BIMG, VROW_B1 = 8, 9
VROW_POOL = 10          # 2B rows of the pooling matrix: [text b | image b]
VEC_ROWS = VROW_POOL + 2 * B


# ------------------------------- fused Pallas kernel ----------------------------
def fused_kernel(text_ref, image_ref, amask_ref, imask_ref,
                 wrow_ref, wcol_ref, vec_ref, out_ref):
    f32 = jnp.float32

    def vrow(r, width=H):
        return vec_ref[r:r + 1, 0:width]                      # (1, width)

    def layernorm(z, g, b):
        mu = jnp.mean(z, axis=-1, keepdims=True)
        var = jnp.mean((z - mu) ** 2, axis=-1, keepdims=True)
        return (z - mu) * jax.lax.rsqrt(var + EPS) * g + b

    # ---- embeddings: flat 2D matmuls (one MXU push each) ----
    tok_emb = wcol_ref[ROW_TOK:ROW_TOK + VOCAB, :]            # (VOCAB, H)
    ids = text_ref[...]                                       # (B, TXT_LEN) int32
    iota_v = jax.lax.broadcasted_iota(jnp.int32, (B, TXT_LEN, VOCAB), 2)
    onehot = (ids[:, :, None] == iota_v).astype(f32)          # (B, TXT_LEN, VOCAB)
    onehot2d = onehot.reshape(BT, VOCAB)                      # batch collapsed (8-row tiles)
    tok2d = jnp.dot(onehot2d, tok_emb, preferred_element_type=f32)   # (BT, H)

    w_imgp = wcol_ref[ROW_IMGP:ROW_IMGP + F_IMG, :]           # (F_IMG, H)
    img2d = jnp.dot(image_ref[...].reshape(BN, F_IMG), w_imgp,
                    preferred_element_type=f32) + vrow(VROW_BIMG)    # (BN, H)

    img_cls = wcol_ref[ROW_CLS:ROW_CLS + 1, :]                # (1, H)

    # assemble [text | IMG_CLS | patches] per batch directly in registers
    parts = []
    for b in range(B):
        parts.append(tok2d[b * TXT_LEN:(b + 1) * TXT_LEN, :])
        parts.append(img_cls)
        parts.append(img2d[b * N_IMG:(b + 1) * N_IMG, :])
    pos = wcol_ref[ROW_POS:ROW_POS + SEQ, :]                  # (SEQ, H)
    pos_full = jnp.concatenate([pos] * B, axis=0)             # (BS, H)
    x2d = jnp.concatenate(parts, axis=0) + pos_full           # (BS, H)

    # ---- block-diagonal attention mask (batch isolation + key padding) ----
    mask_full = jnp.concatenate([amask_ref[...], imask_ref[...]], axis=1)  # (B, SEQ)
    rows = []
    for b in range(B):
        blocks = []
        for b2 in range(B):
            if b2 == b:
                blocks.append(jnp.broadcast_to(mask_full[b:b + 1, :], (SEQ, SEQ)))
            else:
                blocks.append(jnp.zeros((SEQ, SEQ), f32))
        rows.append(jnp.concatenate(blocks, axis=1))
    mask2d = jnp.concatenate(rows, axis=0)                    # (BS, BS)

    # ---- single fused QKV projection (2D) ----
    wqkv = wrow_ref[:, OFF_WQKV:OFF_WQKV + 3 * H]             # (H, 3H)
    qkv = jnp.dot(x2d, wqkv, preferred_element_type=f32)      # (BS, 3H)
    q = qkv[:, 0:H]
    k = qkv[:, H:2 * H]
    v = qkv[:, 2 * H:3 * H]

    # ---- attention as two 2D MXU pushes ----
    scores = jnp.einsum('qd,kd->qk', q, k,
                        preferred_element_type=f32) * (1.0 / math.sqrt(H))
    scores = scores + (mask2d - 1.0) * 1e9                    # cross-batch & pad masked

    m = jnp.max(scores, axis=-1, keepdims=True)
    e = jnp.exp(scores - m)
    denom = jnp.sum(e, axis=-1, keepdims=True)                # (BS, 1), >= 1
    ctx = jnp.dot(e, v, preferred_element_type=f32)           # (BS, H)
    ctx = ctx * pl.reciprocal(denom, approx=True)

    wo = wrow_ref[:, OFF_WO:OFF_WO + H]
    attn = jnp.dot(ctx, wo, preferred_element_type=f32) + vrow(VROW_BO)

    x1 = layernorm(x2d + attn, vrow(VROW_LN1G), vrow(VROW_LN1B))

    w1 = wrow_ref[:, OFF_W1:OFF_W1 + FF]
    w2 = wcol_ref[ROW_W2:ROW_W2 + FF, :]
    ff = jax.nn.gelu(jnp.dot(x1, w1, preferred_element_type=f32) + vrow(VROW_B1, FF))
    ff = jnp.dot(ff, w2, preferred_element_type=f32) + vrow(VROW_B2)

    seq2d = layernorm(x1 + ff, vrow(VROW_LN2G), vrow(VROW_LN2B))   # (BS, H)

    # ---- head: pooling as one matmul, fused text/image projections ----
    pool = vec_ref[VROW_POOL:VROW_POOL + 2 * B, 0:BS]         # (2B, BS) alpha-mixed
    pooled = jnp.dot(pool, seq2d, preferred_element_type=f32)  # [text b.. | image b..]

    whead = wrow_ref[:, OFF_WHEAD:OFF_WHEAD + 2 * H]          # (H, 2H) pre-transposed
    proj = jnp.dot(pooled, whead, preferred_element_type=f32)  # (2B, 2H)
    out_text = proj[0:B, 0:H] + vrow(VROW_BT)                 # (B, H)
    out_image = proj[B:2 * B, H:2 * H] + vrow(VROW_BI)        # (B, H)

    out_ref[...] = jnp.einsum('bh,ch->bc', out_text, out_image,
                              preferred_element_type=f32)     # (B, B)


# ----------------------------------- wrapper ------------------------------------
def forward_fused(text, image, attention_mask, image_mask, w_row, w_col, vec):
    vmem = pl.BlockSpec(memory_space=pltpu.MemorySpace.VMEM)
    return pl.pallas_call(
        fused_kernel,
        out_shape=jax.ShapeDtypeStruct((B, B), jnp.float32),
        in_specs=[vmem] * 7,
        out_specs=vmem,
    )(text, image, attention_mask, image_mask, w_row, w_col, vec)


# ------------------------- parameter init & packing -----------------------------
def init_params(key):
    ks = jax.random.split(key, 16)
    s = 0.02
    n = lambda k, shape: s * jax.random.normal(k, shape, jnp.float32)
    return {
        # TODO(synk): pretrained ImgBERT weights replaced by deterministic random init.
        'tok_emb': n(ks[0], (VOCAB, H)),
        'pos_emb': n(ks[1], (SEQ, H)),
        'img_cls': n(ks[2], (1, H)),
        'w_img_proj': n(ks[3], (F_IMG, H)),
        'b_img_proj': jnp.zeros((H,), jnp.float32),
        'wq': n(ks[4], (H, H)), 'wk': n(ks[5], (H, H)),
        'wv': n(ks[6], (H, H)), 'wo': n(ks[7], (H, H)),
        'bo': jnp.zeros((H,), jnp.float32),
        'ln1g': jnp.ones((H,), jnp.float32), 'ln1b': jnp.zeros((H,), jnp.float32),
        'w1': n(ks[8], (H, FF)), 'b1': jnp.zeros((FF,), jnp.float32),
        'w2': n(ks[9], (FF, H)), 'b2': jnp.zeros((H,), jnp.float32),
        'ln2g': jnp.ones((H,), jnp.float32), 'ln2b': jnp.zeros((H,), jnp.float32),
        'w_text': n(ks[10], (H, H)), 'b_text': jnp.zeros((H,), jnp.float32),
        'w_image': n(ks[11], (H, H)), 'b_image': jnp.zeros((H,), jnp.float32),
    }


def pack_params(p):
    """Pack the ~20 tiny tensors into 3 aligned arrays (done once, outside the hot path)."""
    w_row = jnp.zeros((H, WROW_COLS), jnp.float32)
    w_row = w_row.at[:, OFF_WQKV:OFF_WQKV + 3 * H].set(
        jnp.concatenate([p['wq'], p['wk'], p['wv']], axis=1))
    w_row = w_row.at[:, OFF_WO:OFF_WO + H].set(p['wo'])
    w_row = w_row.at[:, OFF_W1:OFF_W1 + FF].set(p['w1'])
    # fused head slab: nn.Linear does x @ W.T, so store transposed weights
    w_row = w_row.at[:, OFF_WHEAD:OFF_WHEAD + H].set(p['w_text'].T)
    w_row = w_row.at[:, OFF_WHEAD + H:OFF_WHEAD + 2 * H].set(p['w_image'].T)

    w_col = jnp.zeros((WCOL_ROWS, H), jnp.float32)
    w_col = w_col.at[ROW_TOK:ROW_TOK + VOCAB].set(p['tok_emb'])
    w_col = w_col.at[ROW_POS:ROW_POS + SEQ].set(p['pos_emb'])
    w_col = w_col.at[ROW_CLS:ROW_CLS + 1].set(p['img_cls'])
    w_col = w_col.at[ROW_IMGP:ROW_IMGP + F_IMG].set(p['w_img_proj'])
    w_col = w_col.at[ROW_W2:ROW_W2 + FF].set(p['w2'])

    vec = jnp.zeros((VEC_ROWS, FF), jnp.float32)
    vec = vec.at[VROW_BO, :H].set(p['bo'])
    vec = vec.at[VROW_LN1G, :H].set(p['ln1g'])
    vec = vec.at[VROW_LN1B, :H].set(p['ln1b'])
    vec = vec.at[VROW_B2, :H].set(p['b2'])
    vec = vec.at[VROW_LN2G, :H].set(p['ln2g'])
    vec = vec.at[VROW_LN2B, :H].set(p['ln2b'])
    vec = vec.at[VROW_BT, :H].set(p['b_text'])
    vec = vec.at[VROW_BI, :H].set(p['b_image'])
    vec = vec.at[VROW_BIMG, :H].set(p['b_img_proj'])
    vec = vec.at[VROW_B1, :FF].set(p['b1'])

    # pooling matrix: row b (text) / row B+b (image) over flattened (B*SEQ) rows,
    # with the CLS/mean alpha-mix baked in (alpha is a compile-time constant).
    pool = np.zeros((2 * B, FF), np.float32)
    for b in range(B):
        base = b * SEQ
        pool[b, base] = 1.0 - ALPHA
        pool[b, base + 1:base + TXT_LEN] = ALPHA / (TXT_LEN - 1)
        pool[B + b, base + TXT_LEN] = 1.0 - ALPHA
        pool[B + b, base + TXT_LEN + 1:base + SEQ] = ALPHA / N_IMG
    vec = vec.at[VROW_POOL:VROW_POOL + 2 * B, :].set(jnp.asarray(pool))
    return w_row, w_col, vec


# ----------------------------- pure-JAX reference -------------------------------
def reference(text, image, image_mask, attention_mask, alpha, p):
    tok = p['tok_emb'][text]                                    # (B, TXT_LEN, H)
    img_tok = image @ p['w_img_proj'] + p['b_img_proj']         # (B, N_IMG, H)
    img_cls = jnp.broadcast_to(p['img_cls'][None], (B, 1, H))
    x = jnp.concatenate([tok, img_cls, img_tok], axis=1) + p['pos_emb'][None]
    mask = jnp.concatenate([attention_mask, image_mask], axis=1)

    def ln(z, g, b):
        mu = jnp.mean(z, axis=-1, keepdims=True)
        var = jnp.mean((z - mu) ** 2, axis=-1, keepdims=True)
        return (z - mu) * jax.lax.rsqrt(var + EPS) * g + b

    q = jnp.einsum('bsh,hd->bsd', x, p['wq'])
    k = jnp.einsum('bsh,hd->bsd', x, p['wk'])
    v = jnp.einsum('bsh,hd->bsd', x, p['wv'])
    sc = jnp.einsum('bqd,bkd->bqk', q, k) / math.sqrt(H)
    sc = sc + (mask[:, None, :] - 1.0) * 1e9
    pr = jax.nn.softmax(sc, axis=-1)
    ctx = jnp.einsum('bqk,bkd->bqd', pr, v)
    attn = jnp.einsum('bsh,hd->bsd', ctx, p['wo']) + p['bo']
    x1 = ln(x + attn, p['ln1g'], p['ln1b'])
    ff = jax.nn.gelu(jnp.einsum('bsh,hf->bsf', x1, p['w1']) + p['b1'])
    ff = jnp.einsum('bsf,fh->bsh', ff, p['w2']) + p['b2']
    seq = ln(x1 + ff, p['ln2g'], p['ln2b'])

    out_text = (1 - alpha) * seq[:, 0] + alpha * seq[:, 1:TXT_LEN].mean(axis=1)
    out_image = (1 - alpha) * seq[:, TXT_LEN] + alpha * seq[:, TXT_LEN + 1:].mean(axis=1)
    out_text = out_text @ p['w_text'].T + p['b_text']
    out_image = out_image @ p['w_image'].T + p['b_image']
    return out_text @ out_image.T


# ------------------------------------ main ---------------------------------------
if __name__ == "__main__":
    key = jax.random.PRNGKey(0)
    kp, kt, ki = jax.random.split(key, 3)
    params = init_params(kp)
    w_row, w_col, vec = pack_params(params)     # one-time parameter packing

    text = jax.random.randint(kt, (B, TXT_LEN), 0, VOCAB, dtype=jnp.int32)
    image = jax.random.normal(ki, (B, N_IMG, F_IMG), jnp.float32)
    attention_mask = jnp.ones((B, TXT_LEN), jnp.float32).at[:, -1].set(0.0)
    image_mask = jnp.ones((B, 1 + N_IMG), jnp.float32).at[:, -1].set(0.0)

    # single fused kernel launch: embed + encoder + pooling/heads + text@image.T
    out = forward_fused(text, image, attention_mask, image_mask, w_row, w_col, vec)
    out = jax.block_until_ready(out)

    ref = reference(text, image, image_mask, attention_mask, ALPHA, params)
    assert out.shape == (B, B)
    assert jnp.allclose(out, ref, atol=2e-3, rtol=2e-3), (out, ref)
    print("KERNEL_OK")
</pallas_src>

<mosaic_0001>
module attributes {stable_mosaic.version = 11 : i64} {
  func.func @fused_kernel(%arg0: memref<2x8xi32, #tpu.memory_space<vmem>>, %arg1: memref<2x8x48xf32, #tpu.memory_space<vmem>>, %arg2: memref<2x8xf32, #tpu.memory_space<vmem>>, %arg3: memref<2x9xf32, #tpu.memory_space<vmem>>, %arg4: memref<32x512xf32, #tpu.memory_space<vmem>>, %arg5: memref<200x32xf32, #tpu.memory_space<vmem>>, %arg6: memref<14x64xf32, #tpu.memory_space<vmem>>, %arg7: memref<2x2xf32, #tpu.memory_space<vmem>>) attributes {dimension_semantics = [], scalar_prefetch = 0 : i64, scratch_operands = 0 : i64, tpu.core_type = #tpu.core_type<tc>} {
    %c0 = arith.constant 0 : index
    %c0_0 = arith.constant 0 : index
    %0 = vector.load %arg5[%c0, %c0_0] : memref<200x32xf32, #tpu.memory_space<vmem>>, vector<50x32xf32>
    %c0_1 = arith.constant 0 : index
    %c0_2 = arith.constant 0 : index
    %1 = vector.load %arg0[%c0_1, %c0_2] : memref<2x8xi32, #tpu.memory_space<vmem>>, vector<2x8xi32>
    %2 = tpu.iota {dimensions = array<i32: 2>} : vector<2x8x50xi32>
    %3 = vector.shape_cast %1 : vector<2x8xi32> to vector<2x8x1xi32>
    %4 = vector.broadcast %3 : vector<2x8x1xi32> to vector<2x8x50xi32>
    %5 = arith.cmpi eq, %4, %2 : vector<2x8x50xi32>
    %6 = arith.extui %5 : vector<2x8x50xi1> to vector<2x8x50xi32>
    %7 = arith.sitofp %6 : vector<2x8x50xi32> to vector<2x8x50xf32>
    %8 = vector.shape_cast %7 : vector<2x8x50xf32> to vector<16x50xf32>
    %cst = arith.constant dense<0.000000e+00> : vector<16x32xf32>
    %9 = tpu.matmul %8, %0, %cst {dimension_numbers = #tpu.dot_dimension_numbers<[1], [0], [0], [1], [0, 0, 1, 1], [], []>} : vector<16x50xf32>, vector<50x32xf32>, vector<16x32xf32> -> vector<16x32xf32>
    %c88 = arith.constant 88 : index
    %c0_3 = arith.constant 0 : index
    %10 = vector.load %arg5[%c88, %c0_3] : memref<200x32xf32, #tpu.memory_space<vmem>>, vector<48x32xf32>
    %c0_4 = arith.constant 0 : index
    %c0_5 = arith.constant 0 : index
    %c0_6 = arith.constant 0 : index
    %11 = vector.load %arg1[%c0_4, %c0_5, %c0_6] : memref<2x8x48xf32, #tpu.memory_space<vmem>>, vector<2x8x48xf32>
    %12 = vector.shape_cast %11 : vector<2x8x48xf32> to vector<16x48xf32>
    %cst_7 = arith.constant dense<0.000000e+00> : vector<16x32xf32>
    %13 = tpu.matmul %12, %10, %cst_7 {dimension_numbers = #tpu.dot_dimension_numbers<[1], [0], [0], [1], [0, 0, 1, 1], [], []>} : vector<16x48xf32>, vector<48x32xf32>, vector<16x32xf32> -> vector<16x32xf32>
    %c8 = arith.constant 8 : index
    %c0_8 = arith.constant 0 : index
    %14 = vector.load %arg6[%c8, %c0_8] : memref<14x64xf32, #tpu.memory_space<vmem>>, vector<1x32xf32>
    %15 = vector.broadcast %14 : vector<1x32xf32> to vector<16x32xf32>
    %16 = arith.addf %13, %15 : vector<16x32xf32>
    %c80 = arith.constant 80 : index
    %c0_9 = arith.constant 0 : index
    %17 = vector.load %arg5[%c80, %c0_9] : memref<200x32xf32, #tpu.memory_space<vmem>>, vector<1x32xf32>
    %18 = vector.extract_strided_slice %9 {offsets = [0, 0], sizes = [8, 32], strides = [1, 1]} : vector<16x32xf32> to vector<8x32xf32>
    %19 = vector.extract_strided_slice %16 {offsets = [0, 0], sizes = [8, 32], strides = [1, 1]} : vector<16x32xf32> to vector<8x32xf32>
    %20 = vector.extract_strided_slice %9 {offsets = [8, 0], sizes = [8, 32], strides = [1, 1]} : vector<16x32xf32> to vector<8x32xf32>
    %21 = vector.extract_strided_slice %16 {offsets = [8, 0], sizes = [8, 32], strides = [1, 1]} : vector<16x32xf32> to vector<8x32xf32>
    %c56 = arith.constant 56 : index
    %c0_10 = arith.constant 0 : index
    %22 = vector.load %arg5[%c56, %c0_10] : memref<200x32xf32, #tpu.memory_space<vmem>>, vector<17x32xf32>
    %23 = tpu.concatenate %22, %22 in 0 : vector<17x32xf32>, vector<17x32xf32> -> vector<34x32xf32>
    %24 = tpu.concatenate %18, %17, %19, %20, %17, %21 in 0 : vector<8x32xf32>, vector<1x32xf32>, vector<8x32xf32>, vector<8x32xf32>, vector<1x32xf32>, vector<8x32xf32> -> vector<34x32xf32>
    %25 = arith.addf %24, %23 : vector<34x32xf32>
    %c0_11 = arith.constant 0 : index
    %c0_12 = arith.constant 0 : index
    %26 = vector.load %arg2[%c0_11, %c0_12] : memref<2x8xf32, #tpu.memory_space<vmem>>, vector<2x8xf32>
    %c0_13 = arith.constant 0 : index
    %c0_14 = arith.constant 0 : index
    %27 = vector.load %arg3[%c0_13, %c0_14] : memref<2x9xf32, #tpu.memory_space<vmem>>, vector<2x9xf32>
    %28 = tpu.concatenate %26, %27 in 1 : vector<2x8xf32>, vector<2x9xf32> -> vector<2x17xf32>
    %29 = vector.extract_strided_slice %28 {offsets = [0, 0], sizes = [1, 17], strides = [1, 1]} : vector<2x17xf32> to vector<1x17xf32>
    %30 = vector.shape_cast %29 : vector<1x17xf32> to vector<1x17xf32>
    %31 = vector.broadcast %30 : vector<1x17xf32> to vector<17x17xf32>
    %cst_15 = arith.constant 0.000000e+00 : f32
    %32 = vector.broadcast %cst_15 : f32 to vector<17x17xf32>
    %33 = tpu.concatenate %31, %32 in 1 : vector<17x17xf32>, vector<17x17xf32> -> vector<17x34xf32>
    %cst_16 = arith.constant 0.000000e+00 : f32
    %34 = vector.broadcast %cst_16 : f32 to vector<17x17xf32>
    %35 = vector.extract_strided_slice %28 {offsets = [1, 0], sizes = [1, 17], strides = [1, 1]} : vector<2x17xf32> to vector<1x17xf32>
    %36 = vector.shape_cast %35 : vector<1x17xf32> to vector<1x17xf32>
    %37 = vector.broadcast %36 : vector<1x17xf32> to vector<17x17xf32>
    %38 = tpu.concatenate %34, %37 in 1 : vector<17x17xf32>, vector<17x17xf32> -> vector<17x34xf32>
    %39 = tpu.concatenate %33, %38 in 0 : vector<17x34xf32>, vector<17x34xf32> -> vector<34x34xf32>
    %c0_17 = arith.constant 0 : index
    %c0_18 = arith.constant 0 : index
    %40 = vector.load %arg4[%c0_17, %c0_18] : memref<32x512xf32, #tpu.memory_space<vmem>>, vector<32x96xf32>
    %cst_19 = arith.constant dense<0.000000e+00> : vector<34x96xf32>
    %41 = tpu.matmul %25, %40, %cst_19 {dimension_numbers = #tpu.dot_dimension_numbers<[1], [0], [0], [1], [0, 0, 1, 1], [], []>} : vector<34x32xf32>, vector<32x96xf32>, vector<34x96xf32> -> vector<34x96xf32>
    %42 = vector.extract_strided_slice %41 {offsets = [0, 0], sizes = [34, 32], strides = [1, 1]} : vector<34x96xf32> to vector<34x32xf32>
    %43 = vector.extract_strided_slice %41 {offsets = [0, 32], sizes = [34, 32], strides = [1, 1]} : vector<34x96xf32> to vector<34x32xf32>
    %44 = vector.extract_strided_slice %41 {offsets = [0, 64], sizes = [34, 32], strides = [1, 1]} : vector<34x96xf32> to vector<34x32xf32>
    "tpu.trace_start"() <{level = 10 : i32, message = "qd,kd->qk"}> : () -> ()
    %cst_20 = arith.constant dense<0.000000e+00> : vector<34x34xf32>
    %45 = tpu.matmul %42, %43, %cst_20 {dimension_numbers = #tpu.dot_dimension_numbers<[1], [1], [0], [0], [0, 0, 1, 0], [], []>} : vector<34x32xf32>, vector<34x32xf32>, vector<34x34xf32> -> vector<34x34xf32>
    "tpu.trace_stop"() : () -> ()
    %cst_21 = arith.constant 0.176776692 : f32
    %46 = vector.broadcast %cst_21 : f32 to vector<34x34xf32>
    %47 = arith.mulf %45, %46 : vector<34x34xf32>
    %cst_22 = arith.constant 1.000000e+00 : f32
    %48 = vector.broadcast %cst_22 : f32 to vector<34x34xf32>
    %49 = arith.subf %39, %48 : vector<34x34xf32>
    %cst_23 = arith.constant 1.000000e+09 : f32
    %50 = vector.broadcast %cst_23 : f32 to vector<34x34xf32>
    %51 = arith.mulf %49, %50 : vector<34x34xf32>
    %52 = arith.addf %47, %51 : vector<34x34xf32>
    %cst_24 = arith.constant dense<0xFF800000> : vector<34xf32>
    %53 = vector.multi_reduction <maximumf>, %52, %cst_24 [1] : vector<34x34xf32> to vector<34xf32>
    %54 = vector.shape_cast %53 : vector<34xf32> to vector<34x1xf32>
    %55 = vector.broadcast %54 : vector<34x1xf32> to vector<34x34xf32>
    %56 = arith.subf %52, %55 : vector<34x34xf32>
    %57 = math.exp %56 : vector<34x34xf32>
    %cst_25 = arith.constant dense<0.000000e+00> : vector<34xf32>
    %58 = vector.multi_reduction <add>, %57, %cst_25 [1] : vector<34x34xf32> to vector<34xf32>
    %59 = vector.shape_cast %58 : vector<34xf32> to vector<34x1xf32>
    %cst_26 = arith.constant dense<0.000000e+00> : vector<34x32xf32>
    %60 = tpu.matmul %57, %44, %cst_26 {dimension_numbers = #tpu.dot_dimension_numbers<[1], [0], [0], [1], [0, 0, 1, 1], [], []>} : vector<34x34xf32>, vector<34x32xf32>, vector<34x32xf32> -> vector<34x32xf32>
    %61 = tpu.reciprocal %59 {approx = true} : vector<34x1xf32> -> vector<34x1xf32>
    %62 = vector.broadcast %61 : vector<34x1xf32> to vector<34x32xf32>
    %63 = arith.mulf %60, %62 : vector<34x32xf32>
    %c0_27 = arith.constant 0 : index
    %c128 = arith.constant 128 : index
    %64 = vector.load %arg4[%c0_27, %c128] : memref<32x512xf32, #tpu.memory_space<vmem>>, vector<32x32xf32>
    %cst_28 = arith.constant dense<0.000000e+00> : vector<34x32xf32>
    %65 = tpu.matmul %63, %64, %cst_28 {dimension_numbers = #tpu.dot_dimension_numbers<[1], [0], [0], [1], [0, 0, 1, 1], [], []>} : vector<34x32xf32>, vector<32x32xf32>, vector<34x32xf32> -> vector<34x32xf32>
    %c0_29 = arith.constant 0 : index
    %c0_30 = arith.constant 0 : index
    %66 = vector.load %arg6[%c0_29, %c0_30] : memref<14x64xf32, #tpu.memory_space<vmem>>, vector<1x32xf32>
    %67 = vector.broadcast %66 : vector<1x32xf32> to vector<34x32xf32>
    %68 = arith.addf %65, %67 : vector<34x32xf32>
    %69 = arith.addf %25, %68 : vector<34x32xf32>
    %c1 = arith.constant 1 : index
    %c0_31 = arith.constant 0 : index
    %70 = vector.load %arg6[%c1, %c0_31] : memref<14x64xf32, #tpu.memory_space<vmem>>, vector<1x32xf32>
    %c2 = arith.constant 2 : index
    %c0_32 = arith.constant 0 : index
    %71 = vector.load %arg6[%c2, %c0_32] : memref<14x64xf32, #tpu.memory_space<vmem>>, vector<1x32xf32>
    %cst_33 = arith.constant dense<0.000000e+00> : vector<34xf32>
    %72 = vector.multi_reduction <add>, %69, %cst_33 [1] : vector<34x32xf32> to vector<34xf32>
    %73 = vector.shape_cast %72 : vector<34xf32> to vector<34x1xf32>
    %cst_34 = arith.constant 3.200000e+01 : f32
    %74 = vector.broadcast %cst_34 : f32 to vector<34x1xf32>
    %75 = arith.divf %73, %74 : vector<34x1xf32>
    %76 = vector.broadcast %75 : vector<34x1xf32> to vector<34x32xf32>
    %77 = arith.subf %69, %76 : vector<34x32xf32>
    %78 = arith.mulf %77, %77 : vector<34x32xf32>
    %cst_35 = arith.constant dense<0.000000e+00> : vector<34xf32>
    %79 = vector.multi_reduction <add>, %78, %cst_35 [1] : vector<34x32xf32> to vector<34xf32>
    %80 = vector.shape_cast %79 : vector<34xf32> to vector<34x1xf32>
    %cst_36 = arith.constant 3.200000e+01 : f32
    %81 = vector.broadcast %cst_36 : f32 to vector<34x1xf32>
    %82 = arith.divf %80, %81 : vector<34x1xf32>
    %83 = vector.broadcast %75 : vector<34x1xf32> to vector<34x32xf32>
    %84 = arith.subf %69, %83 : vector<34x32xf32>
    %cst_37 = arith.constant 9.99999974E-6 : f32
    %85 = vector.broadcast %cst_37 : f32 to vector<34x1xf32>
    %86 = arith.addf %82, %85 : vector<34x1xf32>
    %87 = math.rsqrt %86 : vector<34x1xf32>
    %88 = vector.broadcast %87 : vector<34x1xf32> to vector<34x32xf32>
    %89 = arith.mulf %84, %88 : vector<34x32xf32>
    %90 = vector.broadcast %70 : vector<1x32xf32> to vector<34x32xf32>
    %91 = arith.mulf %89, %90 : vector<34x32xf32>
    %92 = vector.broadcast %71 : vector<1x32xf32> to vector<34x32xf32>
    %93 = arith.addf %91, %92 : vector<34x32xf32>
    %c0_38 = arith.constant 0 : index
    %c256 = arith.constant 256 : index
    %94 = vector.load %arg4[%c0_38, %c256] : memref<32x512xf32, #tpu.memory_space<vmem>>, vector<32x64xf32>
    %c136 = arith.constant 136 : index
    %c0_39 = arith.constant 0 : index
    %95 = vector.load %arg5[%c136, %c0_39] : memref<200x32xf32, #tpu.memory_space<vmem>>, vector<64x32xf32>
    %cst_40 = arith.constant dense<0.000000e+00> : vector<34x64xf32>
    %96 = tpu.matmul %93, %94, %cst_40 {dimension_numbers = #tpu.dot_dimension_numbers<[1], [0], [0], [1], [0, 0, 1, 1], [], []>} : vector<34x32xf32>, vector<32x64xf32>, vector<34x64xf32> -> vector<34x64xf32>
    %c9 = arith.constant 9 : index
    %c0_41 = arith.constant 0 : index
    %97 = vector.load %arg6[%c9, %c0_41] : memref<14x64xf32, #tpu.memory_space<vmem>>, vector<1x64xf32>
    %98 = vector.broadcast %97 : vector<1x64xf32> to vector<34x64xf32>
    %99 = arith.addf %96, %98 : vector<34x64xf32>
    %100 = arith.mulf %99, %99 : vector<34x64xf32>
    %101 = arith.mulf %99, %100 : vector<34x64xf32>
    %cst_42 = arith.constant 4.471500e-02 : f32
    %102 = vector.broadcast %cst_42 : f32 to vector<34x64xf32>
    %103 = arith.mulf %102, %101 : vector<34x64xf32>
    %104 = arith.addf %99, %103 : vector<34x64xf32>
    %cst_43 = arith.constant 0.797884583 : f32
    %105 = vector.broadcast %cst_43 : f32 to vector<34x64xf32>
    %106 = arith.mulf %105, %104 : vector<34x64xf32>
    %107 = math.tanh %106 : vector<34x64xf32>
    %cst_44 = arith.constant 1.000000e+00 : f32
    %108 = vector.broadcast %cst_44 : f32 to vector<34x64xf32>
    %109 = arith.addf %108, %107 : vector<34x64xf32>
    %cst_45 = arith.constant 5.000000e-01 : f32
    %110 = vector.broadcast %cst_45 : f32 to vector<34x64xf32>
    %111 = arith.mulf %110, %109 : vector<34x64xf32>
    %112 = arith.mulf %99, %111 : vector<34x64xf32>
    %cst_46 = arith.constant dense<0.000000e+00> : vector<34x32xf32>
    %113 = tpu.matmul %112, %95, %cst_46 {dimension_numbers = #tpu.dot_dimension_numbers<[1], [0], [0], [1], [0, 0, 1, 1], [], []>} : vector<34x64xf32>, vector<64x32xf32>, vector<34x32xf32> -> vector<34x32xf32>
    %c3 = arith.constant 3 : index
    %c0_47 = arith.constant 0 : index
    %114 = vector.load %arg6[%c3, %c0_47] : memref<14x64xf32, #tpu.memory_space<vmem>>, vector<1x32xf32>
    %115 = vector.broadcast %114 : vector<1x32xf32> to vector<34x32xf32>
    %116 = arith.addf %113, %115 : vector<34x32xf32>
    %117 = arith.addf %93, %116 : vector<34x32xf32>
    %c4 = arith.constant 4 : index
    %c0_48 = arith.constant 0 : index
    %118 = vector.load %arg6[%c4, %c0_48] : memref<14x64xf32, #tpu.memory_space<vmem>>, vector<1x32xf32>
    %c5 = arith.constant 5 : index
    %c0_49 = arith.constant 0 : index
    %119 = vector.load %arg6[%c5, %c0_49] : memref<14x64xf32, #tpu.memory_space<vmem>>, vector<1x32xf32>
    %cst_50 = arith.constant dense<0.000000e+00> : vector<34xf32>
    %120 = vector.multi_reduction <add>, %117, %cst_50 [1] : vector<34x32xf32> to vector<34xf32>
    %121 = vector.shape_cast %120 : vector<34xf32> to vector<34x1xf32>
    %cst_51 = arith.constant 3.200000e+01 : f32
    %122 = vector.broadcast %cst_51 : f32 to vector<34x1xf32>
    %123 = arith.divf %121, %122 : vector<34x1xf32>
    %124 = vector.broadcast %123 : vector<34x1xf32> to vector<34x32xf32>
    %125 = arith.subf %117, %124 : vector<34x32xf32>
    %126 = arith.mulf %125, %125 : vector<34x32xf32>
    %cst_52 = arith.constant dense<0.000000e+00> : vector<34xf32>
    %127 = vector.multi_reduction <add>, %126, %cst_52 [1] : vector<34x32xf32> to vector<34xf32>
    %128 = vector.shape_cast %127 : vector<34xf32> to vector<34x1xf32>
    %cst_53 = arith.constant 3.200000e+01 : f32
    %129 = vector.broadcast %cst_53 : f32 to vector<34x1xf32>
    %130 = arith.divf %128, %129 : vector<34x1xf32>
    %131 = vector.broadcast %123 : vector<34x1xf32> to vector<34x32xf32>
    %132 = arith.subf %117, %131 : vector<34x32xf32>
    %cst_54 = arith.constant 9.99999974E-6 : f32
    %133 = vector.broadcast %cst_54 : f32 to vector<34x1xf32>
    %134 = arith.addf %130, %133 : vector<34x1xf32>
    %135 = math.rsqrt %134 : vector<34x1xf32>
    %136 = vector.broadcast %135 : vector<34x1xf32> to vector<34x32xf32>
    %137 = arith.mulf %132, %136 : vector<34x32xf32>
    %138 = vector.broadcast %118 : vector<1x32xf32> to vector<34x32xf32>
    %139 = arith.mulf %137, %138 : vector<34x32xf32>
    %140 = vector.broadcast %119 : vector<1x32xf32> to vector<34x32xf32>
    %141 = arith.addf %139, %140 : vector<34x32xf32>
    %c10 = arith.constant 10 : index
    %c0_55 = arith.constant 0 : index
    %142 = vector.load %arg6[%c10, %c0_55] : memref<14x64xf32, #tpu.memory_space<vmem>>, vector<4x34xf32>
    %cst_56 = arith.constant dense<0.000000e+00> : vector<4x32xf32>
    %143 = tpu.matmul %142, %141, %cst_56 {dimension_numbers = #tpu.dot_dimension_numbers<[1], [0], [0], [1], [0, 0, 1, 1], [], []>} : vector<4x34xf32>, vector<34x32xf32>, vector<4x32xf32> -> vector<4x32xf32>
    %c0_57 = arith.constant 0 : index
    %c384 = arith.constant 384 : index
    %144 = vector.load %arg4[%c0_57, %c384] : memref<32x512xf32, #tpu.memory_space<vmem>>, vector<32x64xf32>
    %cst_58 = arith.constant dense<0.000000e+00> : vector<4x64xf32>
    %145 = tpu.matmul %143, %144, %cst_58 {dimension_numbers = #tpu.dot_dimension_numbers<[1], [0], [0], [1], [0, 0, 1, 1], [], []>} : vector<4x32xf32>, vector<32x64xf32>, vector<4x64xf32> -> vector<4x64xf32>
    %146 = vector.extract_strided_slice %145 {offsets = [0, 0], sizes = [2, 32], strides = [1, 1]} : vector<4x64xf32> to vector<2x32xf32>
    %c6 = arith.constant 6 : index
    %c0_59 = arith.constant 0 : index
    %147 = vector.load %arg6[%c6, %c0_59] : memref<14x64xf32, #tpu.memory_space<vmem>>, vector<1x32xf32>
    %148 = vector.broadcast %147 : vector<1x32xf32> to vector<2x32xf32>
    %149 = arith.addf %146, %148 : vector<2x32xf32>
    %150 = vector.extract_strided_slice %145 {offsets = [2, 32], sizes = [2, 32], strides = [1, 1]} : vector<4x64xf32> to vector<2x32xf32>
    %c7 = arith.constant 7 : index
    %c0_60 = arith.constant 0 : index
    %151 = vector.load %arg6[%c7, %c0_60] : memref<14x64xf32, #tpu.memory_space<vmem>>, vector<1x32xf32>
    %152 = vector.broadcast %151 : vector<1x32xf32> to vector<2x32xf32>
    %153 = arith.addf %150, %152 : vector<2x32xf32>
    "tpu.trace_start"() <{level = 10 : i32, message = "bh,ch->bc"}> : () -> ()
    %cst_61 = arith.constant dense<0.000000e+00> : vector<2x2xf32>
    %154 = tpu.matmul %149, %153, %cst_61 {dimension_numbers = #tpu.dot_dimension_numbers<[1], [1], [0], [0], [0, 0, 1, 0], [], []>} : vector<2x32xf32>, vector<2x32xf32>, vector<2x2xf32> -> vector<2x2xf32>
    "tpu.trace_stop"() : () -> ()
    %c0_62 = arith.constant 0 : index
    %c0_63 = arith.constant 0 : index
    %155 = vector.load %arg7[%c0_62, %c0_63] : memref<2x2xf32, #tpu.memory_space<vmem>>, vector<2x2xf32>
    tpu.vector_store %arg7[%c0_62, %c0_63], %154 {strides = array<i32>} : memref<2x2xf32, #tpu.memory_space<vmem>>, vector<2x2xf32>,
    return
  }
}

</mosaic_0001>

<llo_original>
// kernel: tpu_custom_call.1
$region0: #{tpu_custom_call.1}
  #allocation0 [shape = 'u32[]', space=smem, size = 0x4, offset = 0x4, fixed_abs, tag = 'smem constant byte address 0x4 - core index']
  #allocation1 [shape = 'u32[144,128]{1,0:T(1,128)}', space=vmem, size = 0x12000, scoped, tag = 'internal scratch']
  %s0 = inlined_call_operand.vmem [shape: s32[2,8], index: 0, kind: input, shape index: {}]
  %s1 = inlined_call_operand.vmem [shape: f32[2,8,48], index: 1, kind: input, shape index: {}]
  %s2 = inlined_call_operand.vmem [shape: f32[2,8], index: 2, kind: input, shape index: {}]
  %s3 = inlined_call_operand.vmem [shape: f32[2,9], index: 3, kind: input, shape index: {}]
  %s4 = inlined_call_operand.vmem [shape: f32[32,512], index: 4, kind: input, shape index: {}]
  %s5 = inlined_call_operand.vmem [shape: f32[200,32], index: 5, kind: input, shape index: {}]
  %s6 = inlined_call_operand.vmem [shape: f32[14,64], index: 6, kind: input, shape index: {}]
  %s7 = inlined_call_operand.hbm [shape: f32[2,2], index: 7, kind: output, shape index: {}]
  %s8 = sld [smem:[#allocation0]]
  $region38: #{tpu_custom_call.1} parent=0
    _
  %s10 = ssub.s32 1, %s8
  %s11 = scalar_select 0, %s10, %s8
  $region1: #{tpu_custom_call.1} parent=0
    #allocation2 [shape = 'u8[1024]{0}', space=vmem, size = 0x400, scoped, tag = 'output window, operand 0, single buffered']
    #allocation3 [shape = 's32[1]{0}', space=sflag, size = 0x4, scoped, tag = 'scoped memory for tpu_custom_call.1']
    %12 = vsyncpa [#allocation3], 0
    // Predicated region
    $region2: #{tpu_custom_call.1} parent=1 // pred_check
      _
    $region3: #{tpu_custom_call.1} parent=1 // pred_check_branch
      %14 = sbr.rel (0) target = $region5
    $region4: #{tpu_custom_call.1} parent=1 // pred_region
      _
    $region5: #{tpu_custom_call.1} parent=1 // pred_fallthru
      _
    // Predicated region
    $region6: #{tpu_custom_call.1} parent=1 // pred_check
      _
    $region7: #{tpu_custom_call.1} parent=1 // pred_check_branch
      %16 = sbr.rel (0) target = $region9
    $region8: #{tpu_custom_call.1} parent=1 // pred_region
      _
    $region9: #{tpu_custom_call.1} parent=1 // pred_fallthru
      _
    // Predicated region
    $region10: #{tpu_custom_call.1} parent=1 // pred_check
      _
    $region11: #{tpu_custom_call.1} parent=1 // pred_check_branch
      %18 = sbr.rel (0) target = $region13
    $region12: #{tpu_custom_call.1} parent=1 // pred_region
      _
    $region13: #{tpu_custom_call.1} parent=1 // pred_fallthru
      _
    // Predicated region
    $region14: #{tpu_custom_call.1} parent=1 // pred_check
      _
    $region15: #{tpu_custom_call.1} parent=1 // pred_check_branch
      %20 = sbr.rel (0) target = $region17
    $region16: #{tpu_custom_call.1} parent=1 // pred_region
      _
    $region17: #{tpu_custom_call.1} parent=1 // pred_fallthru
      _
    // Predicated region
    $region18: #{tpu_custom_call.1} parent=1 // pred_check
      _
    $region19: #{tpu_custom_call.1} parent=1 // pred_check_branch
      %22 = sbr.rel (0) target = $region21
    $region20: #{tpu_custom_call.1} parent=1 // pred_region
      _
    $region21: #{tpu_custom_call.1} parent=1 // pred_fallthru
      _
    // Predicated region
    $region22: #{tpu_custom_call.1} parent=1 // pred_check
      _
    $region23: #{tpu_custom_call.1} parent=1 // pred_check_branch
      %24 = sbr.rel (0) target = $region25
    $region24: #{tpu_custom_call.1} parent=1 // pred_region
      _
    $region25: #{tpu_custom_call.1} parent=1 // pred_fallthru
      _
    // Predicated region
    $region26: #{tpu_custom_call.1} parent=1 // pred_check
      _
    $region27: #{tpu_custom_call.1} parent=1 // pred_check_branch
      %26 = sbr.rel (0) target = $region29
    $region28: #{tpu_custom_call.1} parent=1 // pred_region
      _
    $region29: #{tpu_custom_call.1} parent=1 // pred_fallthru
      _
    %v27 = vld [vmem:[%s5] sm:$0xff]
    %v28 = vld [vmem:[%s5 + $0x8] sm:$0xff]
    %v29 = vld [vmem:[%s5 + $0x10] sm:$0xff]
    %v30 = vld [vmem:[%s5 + $0x18] sm:$0xff]
    %v31 = vld [vmem:[%s5 + $0x20] sm:$0xff]
    %v32 = vld [vmem:[%s5 + $0x28] sm:$0xff]
    %v33 = vld [vmem:[%s5 + $0x30] sm:$0x3]
    %v34 = vld [vmem:[%s0] sm:$0x3]
    %v35 = vlaneseq
    %v36 = vand.u32 %v35, 127
    %v37 = vlaneseq
    %v38 = vshrl.u32 %v37, 7
    %v39 = vsub.s32 0, %v38
    %v40 = vrot.slane %v34, %v39
    %42 = vbcast.lane.b32.xlu0 %v40, 256
    %v43 = vpop.permute.xlu0 %42
    %v44 = vlaneseq
    %v45 = vshrl.u32 %v44, 7
    %v46 = vsub.s32 1, %v45
    %v47 = vrot.slane %v34, %v46
    %49 = vbcast.lane.b32.xlu0 %v47, 256
    %v50 = vpop.permute.xlu0 %49
    %vm51 = vcmp.eq.s32.totalorder %v43, %v36
    %vm52 = vcmp.eq.s32.totalorder %v50, %v36
    %v53 = vsel %vm51, 1, 0
    %v54 = vsel %vm52, 1, 0
    %v55 = vcvt.s32.f32 %v53
    %v56 = vcvt.s32.f32 %v54
    %vm57 = vcmask 408576
    %v59 = vsel %vm57, %v55, 0
    %v62 = vsel %vm57, %v56, 0
    %vm64 = vcmask 1041408
    %v66 = vsel %vm64, %v33, 0
    %68 = vmatprep.subr.mxu0 0.0
    %69 = vmatpush1.msra.mxu0 %v27
    %70 = vmatprep.subr.mxu0 0.0
    %71 = vmatpush1.msra.mxu0 %v28
    %72 = vmatprep.subr.mxu0 0.0
    %73 = vmatpush1.msra.mxu0 %v29
    %74 = vmatprep.subr.mxu0 0.0
    %75 = vmatpush1.msra.mxu0 %v30
    %76 = vmatprep.subr.mxu0 0.0
    %77 = vmatpush1.msra.mxu0 %v31
    %78 = vmatprep.subr.mxu0 0.0
    %79 = vmatpush1.msra.mxu0 %v32
    %80 = vmatprep.subr.mxu0 0.0
    %81 = vmatpush1.msra.mxu0 %v66
    %82 = vmatprep.subr.mxu0 0.0
    %83 = vmatpush1.msra.mxu0 0.0
    %84 = vmatprep.subr.mxu0 0.0
    %85 = vmatpush1.msra.mxu0 0.0
    %86 = vmatprep.subr.mxu0 0.0
    %87 = vmatpush1.msra.mxu0 0.0
    %88 = vmatprep.subr.mxu0 0.0
    %89 = vmatpush1.msra.mxu0 0.0
    %90 = vmatprep.subr.mxu0 0.0
    %91 = vmatpush1.msra.mxu0 0.0
    %92 = vmatprep.subr.mxu0 0.0
    %93 = vmatpush1.msra.mxu0 0.0
    %94 = vmatprep.subr.mxu0 0.0
    %95 = vmatpush1.msra.mxu0 0.0
    %96 = vmatprep.subr.mxu0 0.0
    %97 = vmatpush1.msra.mxu0 0.0
    %98 = vmatprep.subr.mxu0 0.0
    %99 = vmatpush1.msra.mxu0 0.0
    %100 = vmatprep.subr.mxu0 0.0
    %101 = vmatpush1.msra.mxu0 0.0
    %102 = vmatprep.subr.mxu0 0.0
    %103 = vmatpush1.msra.mxu0 0.0
    %104 = vmatprep.subr.mxu0 0.0
    %105 = vmatpush1.msra.mxu0 0.0
    %106 = vmatprep.subr.mxu0 0.0
    %107 = vmatpush1.msra.mxu0 0.0
    %108 = vmatprep.subr.mxu0 0.0
    %109 = vmatpush1.msra.mxu0 0.0
    %110 = vmatprep.subr.mxu0 0.0
    %111 = vmatpush1.msra.mxu0 0.0
    %112 = vmatprep.subr.mxu0 0.0
    %113 = vmatpush1.msra.mxu0 0.0
    %114 = vmatprep.subr.mxu0 0.0
    %115 = vmatpush1.msra.mxu0 0.0
    %116 = vmatprep.subr.mxu0 0.0
    %117 = vmatpush1.msra.mxu0 0.0
    %118 = vmatprep.subr.mxu0 0.0
    %119 = vmatpush1.msra.mxu0 0.0
    %120 = vmatprep.subr.mxu0 0.0
    %121 = vmatpush1.msra.mxu0 0.0
    %122 = vmatprep.subr.mxu0 0.0
    %123 = vmatpush1.msra.mxu0 0.0
    %124 = vmatprep.subr.mxu0 0.0
    %125 = vmatpush1.msra.mxu0 0.0
    %126 = vmatprep.subr.mxu0 0.0
    %127 = vmatpush1.msra.mxu0 0.0
    %128 = vmatprep.subr.mxu0 0.0
    %129 = vmatpush1.msra.mxu0 0.0
    %130 = vmatprep.subr.mxu0 0.0
    %131 = vmatpush1.msra.mxu0 0.0
    %132 = vmatprep.mubr.f32.mxu0 0.0
    %133 = vmatmul.mubr.f32.gmra.mrb[0].mxu0 %v59
    %v134 = vpop.f32.mrb[0].mxu0
    %v135 = vadd.f32 0.0, %v134
    %v136 = vpop.f32.mrb[0].mxu0
    %137 = vmatprep.mubr.f32.mxu0 0.0
    %138 = vmatmul.mubr.f32.gmra.mrb[0].mxu0 %v62
    %v139 = vpop.f32.mrb[0].mxu0
    %v140 = vadd.f32 0.0, %v139
    %v141 = vpop.f32.mrb[0].mxu0
    %142 = vdwg.mxu0
    %v143 = vld [vmem:[%s5 + $0x58] sm:$0xff]
    %v144 = vld [vmem:[%s5 + $0x60] sm:$0xff]
    %v145 = vld [vmem:[%s5 + $0x68] sm:$0xff]
    %v146 = vld [vmem:[%s5 + $0x70] sm:$0xff]
    %v147 = vld [vmem:[%s5 + $0x78] sm:$0xff]
    %v148 = vld [vmem:[%s5 + $0x80] sm:$0xff]
    %v149 = vld [vmem:[%s1] sm:$0xff]
    %v150 = vld [vmem:[%s1 + $0x8] sm:$0xff]
    %v151 = vld [vmem:[%s6 + $0x8] sm:$0x1]
    %v152 = vlaneseq
    %v153 = vshrl.u32 %v152, 7
    %v154 = vsub.s32 0, %v153
    %v155 = vrot.slane %v151, %v154
    %vm156 = vcmask 392192
    %v158 = vsel %vm156, %v149, 0
    %v161 = vsel %vm156, %v150, 0
    %163 = vmatprep.subr.mxu0 0.0
    %164 = vmatpush1.msra.mxu0 %v143
    %165 = vmatprep.subr.mxu0 0.0
    %166 = vmatpush1.msra.mxu0 %v144
    %167 = vmatprep.subr.mxu0 0.0
    %168 = vmatpush1.msra.mxu0 %v145
    %169 = vmatprep.subr.mxu0 0.0
    %170 = vmatpush1.msra.mxu0 %v146
    %171 = vmatprep.subr.mxu0 0.0
    %172 = vmatpush1.msra.mxu0 %v147
    %173 = vmatprep.subr.mxu0 0.0
    %174 = vmatpush1.msra.mxu0 %v148
    %175 = vmatprep.subr.mxu0 0.0
    %176 = vmatpush1.msra.mxu0 0.0
    %177 = vmatprep.subr.mxu0 0.0
    %178 = vmatpush1.msra.mxu0 0.0
    %179 = vmatprep.subr.mxu0 0.0
    %180 = vmatpush1.msra.mxu0 0.0
    %181 = vmatprep.subr.mxu0 0.0
    %182 = vmatpush1.msra.mxu0 0.0
    %183 = vmatprep.subr.mxu0 0.0
    %184 = vmatpush1.msra.mxu0 0.0
    %185 = vmatprep.subr.mxu0 0.0
    %186 = vmatpush1.msra.mxu0 0.0
    %187 = vmatprep.subr.mxu0 0.0
    %188 = vmatpush1.msra.mxu0 0.0
    %189 = vmatprep.subr.mxu0 0.0
    %190 = vmatpush1.msra.mxu0 0.0
    %191 = vmatprep.subr.mxu0 0.0
    %192 = vmatpush1.msra.mxu0 0.0
    %193 = vmatprep.subr.mxu0 0.0
    %194 = vmatpush1.msra.mxu0 0.0
    %195 = vmatprep.subr.mxu0 0.0
    %196 = vmatpush1.msra.mxu0 0.0
    %197 = vmatprep.subr.mxu0 0.0
    %198 = vmatpush1.msra.mxu0 0.0
    %199 = vmatprep.subr.mxu0 0.0
    %200 = vmatpush1.msra.mxu0 0.0
    %201 = vmatprep.subr.mxu0 0.0
    %202 = vmatpush1.msra.mxu0 0.0
    %203 = vmatprep.subr.mxu0 0.0
    %204 = vmatpush1.msra.mxu0 0.0
    %205 = vmatprep.subr.mxu0 0.0
    %206 = vmatpush1.msra.mxu0 0.0
    %207 = vmatprep.subr.mxu0 0.0
    %208 = vmatpush1.msra.mxu0 0.0
    %209 = vmatprep.subr.mxu0 0.0
    %210 = vmatpush1.msra.mxu0 0.0
    %211 = vmatprep.subr.mxu0 0.0
    %212 = vmatpush1.msra.mxu0 0.0
    %213 = vmatprep.subr.mxu0 0.0
    %214 = vmatpush1.msra.mxu0 0.0
    %215 = vmatprep.subr.mxu0 0.0
    %216 = vmatpush1.msra.mxu0 0.0
    %217 = vmatprep.subr.mxu0 0.0
    %218 = vmatpush1.msra.mxu0 0.0
    %219 = vmatprep.subr.mxu0 0.0
    %220 = vmatpush1.msra.mxu0 0.0
    %221 = vmatprep.subr.mxu0 0.0
    %222 = vmatpush1.msra.mxu0 0.0
    %223 = vmatprep.subr.mxu0 0.0
    %224 = vmatpush1.msra.mxu0 0.0
    %225 = vmatprep.subr.mxu0 0.0
    %226 = vmatpush1.msra.mxu0 0.0
    %227 = vmatprep.mubr.f32.mxu0 0.0
    %228 = vmatmul.mubr.f32.gmra.mrb[0].mxu0 %v158
    %v229 = vpop.f32.mrb[0].mxu0
    %v230 = vadd.f32 %v155, %v229
    %v231 = vpop.f32.mrb[0].mxu0
    %232 = vmatprep.mubr.f32.mxu0 0.0
    %233 = vmatmul.mubr.f32.gmra.mrb[0].mxu0 %v161
    %v234 = vpop.f32.mrb[0].mxu0
    %v235 = vadd.f32 %v155, %v234
    %v236 = vpop.f32.mrb[0].mxu0
    %237 = vdwg.mxu0
    %v238 = vld [vmem:[%s5 + $0x50] sm:$0x1]
    %v239 = vld [vmem:[%s5 + $0x38] sm:$0xff]
    %v240 = vld [vmem:[%s5 + $0x40] sm:$0xff]
    %v241 = vld [vmem:[%s5 + $0x48] sm:$0x1]
    %vm245 = vcmask 1040384
    %v246 = vrot.slane %v239, 7
    %v247 = vrot.slane %v240, 7
    %v248 = vsel %vm245, %v246, %v247
    %v249 = vrot.slane %v241, 7
    %v250 = vsel %vm245, %v247, %v249
    %v254 = vsel %vm245, %v241, %v246
    %v256 = vrot.slane %v230, 7
    %v259 = vrot.slane %v140, 7
    %v262 = vrot.slane %v238, 7
    %v265 = vrot.slane %v235, 6
    %v267 = vsel %vm245, %v238, %v256
    %v268 = vsel %vm245, %v256, %v259
    %v269 = vsel %vm245, %v259, %v262
    %v270 = vsel %vm64, %v269, %v265
    %v271 = vadd.f32 %v135, %v239
    %v272 = vadd.f32 %v267, %v240
    %v273 = vadd.f32 %v268, %v254
    %v274 = vadd.f32 %v270, %v248
    %v275 = vadd.f32 %v265, %v250
    %v276 = vld [vmem:[%s2] sm:$0x3]
    %v277 = vld [vmem:[%s3] sm:$0x3]
    %279 = vrot.lane.b32.xlu0 %v277, 8
    %v280 = vpop.permute.xlu0 %279
    %vm282 = vcmask 64512
    %v283 = vsel %vm282, %v276, %v280
    %v284 = vlaneseq
    %v285 = vshrl.u32 %v284, 7
    %v286 = vsub.s32 0, %v285
    %v287 = vrot.slane %v283, %v286
    %vm288 = vcmask 138240
    %v289 = vsel %vm288, %v287, 0.0
    %v290 = vlaneseq
    %v291 = vshrl.u32 %v290, 7
    %v292 = vsub.s32 1, %v291
    %v293 = vrot.slane %v283, %v292
    %295 = vrot.lane.b32.xlu0 %v293, 17
    %v296 = vpop.permute.xlu0 %295
    %v298 = vsel %vm288, 0.0, %v296
    %v300 = vrot.slane %v298, 7
    %v301 = vsel %vm245, %v300, %v300
    %v304 = vsel %vm245, %v289, %v300
    %v305 = vld [vmem:[%s4] sm:$0xff]
    %v306 = vld [vmem:[%s4 + $0x20] sm:$0xff]
    %v307 = vld [vmem:[%s4 + $0x40] sm:$0xff]
    %v308 = vld [vmem:[%s4 + $0x60] sm:$0xff]
    %vm309 = vcmask 261120
    %v311 = vsel %vm309, %v271, 0
    %v314 = vsel %vm309, %v272, 0
    %v317 = vsel %vm309, %v273, 0
    %v320 = vsel %vm309, %v274, 0
    %v323 = vsel %vm309, %v275, 0
    %325 = vmatprep.subr.mxu0 0.0
    %326 = vmatpush1.msra.mxu0 %v305
    %327 = vmatprep.subr.mxu0 0.0
    %328 = vmatpush1.msra.mxu0 %v306
    %329 = vmatprep.subr.mxu0 0.0
    %330 = vmatpush1.msra.mxu0 %v307
    %331 = vmatprep.subr.mxu0 0.0
    %332 = vmatpush1.msra.mxu0 %v308
    %333 = vmatprep.subr.mxu0 0.0
    %334 = vmatpush1.msra.mxu0 0.0
    %335 = vmatprep.subr.mxu0 0.0
    %336 = vmatpush1.msra.mxu0 0.0
    %337 = vmatprep.subr.mxu0 0.0
    %338 = vmatpush1.msra.mxu0 0.0
    %339 = vmatprep.subr.mxu0 0.0
    %340 = vmatpush1.msra.mxu0 0.0
    %341 = vmatprep.subr.mxu0 0.0
    %342 = vmatpush1.msra.mxu0 0.0
    %343 = vmatprep.subr.mxu0 0.0
    %344 = vmatpush1.msra.mxu0 0.0
    %345 = vmatprep.subr.mxu0 0.0
    %346 = vmatpush1.msra.mxu0 0.0
    %347 = vmatprep.subr.mxu0 0.0
    %348 = vmatpush1.msra.mxu0 0.0
    %349 = vmatprep.subr.mxu0 0.0
    %350 = vmatpush1.msra.mxu0 0.0
    %351 = vmatprep.subr.mxu0 0.0
    %352 = vmatpush1.msra.mxu0 0.0
    %353 = vmatprep.subr.mxu0 0.0
    %354 = vmatpush1.msra.mxu0 0.0
    %355 = vmatprep.subr.mxu0 0.0
    %356 = vmatpush1.msra.mxu0 0.0
    %357 = vmatprep.subr.mxu0 0.0
    %358 = vmatpush1.msra.mxu0 0.0
    %359 = vmatprep.subr.mxu0 0.0
    %360 = vmatpush1.msra.mxu0 0.0
    %361 = vmatprep.subr.mxu0 0.0
    %362 = vmatpush1.msra.mxu0 0.0
    %363 = vmatprep.subr.mxu0 0.0
    %364 = vmatpush1.msra.mxu0 0.0
    %365 = vmatprep.subr.mxu0 0.0
    %366 = vmatpush1.msra.mxu0 0.0
    %367 = vmatprep.subr.mxu0 0.0
    %368 = vmatpush1.msra.mxu0 0.0
    %369 = vmatprep.subr.mxu0 0.0
    %370 = vmatpush1.msra.mxu0 0.0
    %371 = vmatprep.subr.mxu0 0.0
    %372 = vmatpush1.msra.mxu0 0.0
    %373 = vmatprep.subr.mxu0 0.0
    %374 = vmatpush1.msra.mxu0 0.0
    %375 = vmatprep.subr.mxu0 0.0
    %376 = vmatpush1.msra.mxu0 0.0
    %377 = vmatprep.subr.mxu0 0.0
    %378 = vmatpush1.msra.mxu0 0.0
    %379 = vmatprep.subr.mxu0 0.0
    %380 = vmatpush1.msra.mxu0 0.0
    %381 = vmatprep.subr.mxu0 0.0
    %382 = vmatpush1.msra.mxu0 0.0
    %383 = vmatprep.subr.mxu0 0.0
    %384 = vmatpush1.msra.mxu0 0.0
    %385 = vmatprep.subr.mxu0 0.0
    %386 = vmatpush1.msra.mxu0 0.0
    %387 = vmatprep.subr.mxu0 0.0
    %388 = vmatpush1.msra.mxu0 0.0
    %389 = vmatprep.mubr.f32.mxu0 0.0
    %390 = vmatmul.mubr.f32.gmra.mrb[0].mxu0 %v311
    %v391 = vpop.f32.mrb[0].mxu0
    %v392 = vadd.f32 0.0, %v391
    %v393 = vpop.f32.mrb[0].mxu0
    %394 = vmatprep.mubr.f32.mxu0 0.0
    %395 = vmatmul.mubr.f32.gmra.mrb[0].mxu0 %v314
    %v396 = vpop.f32.mrb[0].mxu0
    %v397 = vadd.f32 0.0, %v396
    %v398 = vpop.f32.mrb[0].mxu0
    %399 = vmatprep.mubr.f32.mxu0 0.0
    %400 = vmatmul.mubr.f32.gmra.mrb[0].mxu0 %v317
    %v401 = vpop.f32.mrb[0].mxu0
    %v402 = vadd.f32 0.0, %v401
    %v403 = vpop.f32.mrb[0].mxu0
    %404 = vmatprep.mubr.f32.mxu0 0.0
    %405 = vmatmul.mubr.f32.gmra.mrb[0].mxu0 %v320
    %v406 = vpop.f32.mrb[0].mxu0
    %v407 = vadd.f32 0.0, %v406
    %v408 = vpop.f32.mrb[0].mxu0
    %409 = vmatprep.mubr.f32.mxu0 0.0
    %410 = vmatmul.mubr.f32.gmra.mrb[0].mxu0 %v323
    %v411 = vpop.f32.mrb[0].mxu0
    %v412 = vadd.f32 0.0, %v411
    %v413 = vpop.f32.mrb[0].mxu0
    %414 = vdwg.mxu0
    %420 = vrot.lane.b32.xlu0 %v392, 96
    %v421 = vpop.permute.xlu0 %420
    %422 = vrot.lane.b32.xlu0 %v397, 96
    %v423 = vpop.permute.xlu0 %422
    %424 = vrot.lane.b32.xlu0 %v402, 96
    %v425 = vpop.permute.xlu0 %424
    %426 = vrot.lane.b32.xlu0 %v407, 96
    %v427 = vpop.permute.xlu0 %426
    %428 = vrot.lane.b32.xlu0 %v412, 96
    %v429 = vpop.permute.xlu0 %428
    %v430 = vsel %vm309, %v392, 0
    %v432 = vsel %vm309, %v397, 0
    %v434 = vsel %vm309, %v402, 0
    %v436 = vsel %vm309, %v407, 0
    %v438 = vsel %vm309, %v412, 0
    %v440 = vsel %vm309, %v421, 0
    %v442 = vsel %vm309, %v423, 0
    %v444 = vsel %vm309, %v425, 0
    %v446 = vsel %vm309, %v427, 0
    %v448 = vsel %vm309, %v429, 0
    %450 = vmatprep.subr.mxu0 0.0
    %451 = vmatpush1.xpose.msra.mxu0 %v440
    %452 = vmatprep.subr.mxu0 0.0
    %453 = vmatpush1.xpose.msra.mxu0 %v442
    %454 = vmatprep.subr.mxu0 0.0
    %455 = vmatpush1.xpose.msra.mxu0 %v444
    %456 = vmatprep.subr.mxu0 0.0
    %457 = vmatpush1.xpose.msra.mxu0 %v446
    %458 = vmatprep.subr.mxu0 0.0
    %459 = vmatpush1.xpose.msra.mxu0 %v448
    %460 = vmatprep.subr.mxu0 0.0
    %461 = vmatpush1.xpose.msra.mxu0 0.0
    %462 = vmatprep.subr.mxu0 0.0
    %463 = vmatpush1.xpose.msra.mxu0 0.0
    %464 = vmatprep.subr.mxu0 0.0
    %465 = vmatpush1.xpose.msra.mxu0 0.0
    %466 = vmatprep.subr.mxu0 0.0
    %467 = vmatpush1.xpose.msra.mxu0 0.0
    %468 = vmatprep.subr.mxu0 0.0
    %469 = vmatpush1.xpose.msra.mxu0 0.0
    %470 = vmatprep.subr.mxu0 0.0
    %471 = vmatpush1.xpose.msra.mxu0 0.0
    %472 = vmatprep.subr.mxu0 0.0
    %473 = vmatpush1.xpose.msra.mxu0 0.0
    %474 = vmatprep.subr.mxu0 0.0
    %475 = vmatpush1.xpose.msra.mxu0 0.0
    %476 = vmatprep.subr.mxu0 0.0
    %477 = vmatpush1.xpose.msra.mxu0 0.0
    %478 = vmatprep.subr.mxu0 0.0
    %479 = vmatpush1.xpose.msra.mxu0 0.0
    %480 = vmatprep.subr.mxu0 0.0
    %481 = vmatpush1.xpose.msra.mxu0 0.0
    %482 = vmatprep.subr.mxu0 0.0
    %483 = vmatpush1.xpose.msra.mxu0 0.0
    %484 = vmatprep.subr.mxu0 0.0
    %485 = vmatpush1.xpose.msra.mxu0 0.0
    %486 = vmatprep.subr.mxu0 0.0
    %487 = vmatpush1.xpose.msra.mxu0 0.0
    %488 = vmatprep.subr.mxu0 0.0
    %489 = vmatpush1.xpose.msra.mxu0 0.0
    %490 = vmatprep.subr.mxu0 0.0
    %491 = vmatpush1.xpose.msra.mxu0 0.0
    %492 = vmatprep.subr.mxu0 0.0
    %493 = vmatpush1.xpose.msra.mxu0 0.0
    %494 = vmatprep.subr.mxu0 0.0
    %495 = vmatpush1.xpose.msra.mxu0 0.0
    %496 = vmatprep.subr.mxu0 0.0
    %497 = vmatpush1.xpose.msra.mxu0 0.0
    %498 = vmatprep.subr.mxu0 0.0
    %499 = vmatpush1.xpose.msra.mxu0 0.0
    %500 = vmatprep.subr.mxu0 0.0
    %501 = vmatpush1.xpose.msra.mxu0 0.0
    %502 = vmatprep.subr.mxu0 0.0
    %503 = vmatpush1.xpose.msra.mxu0 0.0
    %504 = vmatprep.subr.mxu0 0.0
    %505 = vmatpush1.xpose.msra.mxu0 0.0
    %506 = vmatprep.subr.mxu0 0.0
    %507 = vmatpush1.xpose.msra.mxu0 0.0
    %508 = vmatprep.subr.mxu0 0.0
    %509 = vmatpush1.xpose.msra.mxu0 0.0
    %510 = vmatprep.subr.mxu0 0.0
    %511 = vmatpush1.xpose.msra.mxu0 0.0
    %512 = vmatprep.subr.mxu0 0.0
    %513 = vmatpush1.xpose.msra.mxu0 0.0
    %514 = vmatprep.mubr.f32.mxu0 0.0
    %515 = vmatmul.mubr.f32.gmra.mrb[0].mxu0 %v430
    %v516 = vpop.f32.mrb[0].mxu0
    %v517 = vadd.f32 0.0, %v516
    %v518 = vpop.f32.mrb[0].mxu0
    %519 = vmatprep.mubr.f32.mxu0 0.0
    %520 = vmatmul.mubr.f32.gmra.mrb[0].mxu0 %v432
    %v521 = vpop.f32.mrb[0].mxu0
    %v522 = vadd.f32 0.0, %v521
    %v523 = vpop.f32.mrb[0].mxu0
    %524 = vmatprep.mubr.f32.mxu0 0.0
    %525 = vmatmul.mubr.f32.gmra.mrb[0].mxu0 %v434
    %v526 = vpop.f32.mrb[0].mxu0
    %v527 = vadd.f32 0.0, %v526
    %v528 = vpop.f32.mrb[0].mxu0
    %529 = vmatprep.mubr.f32.mxu0 0.0
    %530 = vmatmul.mubr.f32.gmra.mrb[0].mxu0 %v436
    %v531 = vpop.f32.mrb[0].mxu0
    %v532 = vadd.f32 0.0, %v531
    %v533 = vpop.f32.mrb[0].mxu0
    %534 = vmatprep.mubr.f32.mxu0 0.0
    %535 = vmatmul.mubr.f32.gmra.mrb[0].mxu0 %v438
    %v536 = vpop.f32.mrb[0].mxu0
    %v537 = vadd.f32 0.0, %v536
    %v538 = vpop.f32.mrb[0].mxu0
    %539 = vdwg.mxu0
    %v540 = vmul.f32 %v517, 0.17677669
    %v541 = vmul.f32 %v522, 0.17677669
    %v542 = vmul.f32 %v527, 0.17677669
    %v543 = vmul.f32 %v532, 0.17677669
    %v544 = vmul.f32 %v537, 0.17677669
    %v545 = vsub.f32 %v289, 1.0
    %v546 = vsub.f32 %v304, 1.0
    %v547 = vsub.f32 %v301, 1.0
    %v548 = vmul.f32 %v545, 1e+09
    %v549 = vmul.f32 %v546, 1e+09
    %v550 = vmul.f32 %v547, 1e+09
    %v551 = vadd.f32 %v540, %v548
    %v552 = vadd.f32 %v541, %v548
    %v553 = vadd.f32 %v542, %v549
    %v554 = vadd.f32 %v543, %v550
    %v555 = vadd.f32 %v544, %v550
    %vm556 = vcmask 277504
    %v557 = vsel %vm556, %v551, -inf
    %558 = vmax.xlane.f32.xlu0 %v557
    %v559 = vpop.xlane.xlu0 %558
    %v560 = vsel %vm556, %v552, -inf
    %561 = vmax.xlane.f32.xlu0 %v560
    %v562 = vpop.xlane.xlu0 %561
    %v563 = vsel %vm556, %v553, -inf
    %564 = vmax.xlane.f32.xlu0 %v563
    %v565 = vpop.xlane.xlu0 %564
    %v566 = vsel %vm556, %v554, -inf
    %567 = vmax.xlane.f32.xlu0 %v566
    %v568 = vpop.xlane.xlu0 %567
    %vm569 = vcmask 271360
    %v570 = vsel %vm569, %v555, -inf
    %571 = vmax.xlane.f32.xlu0 %v570
    %v572 = vpop.xlane.xlu0 %571
    %v573 = vsub.f32 %v551, %v559
    %v574 = vsub.f32 %v552, %v562
    %v575 = vsub.f32 %v553, %v565
    %v576 = vsub.f32 %v554, %v568
    %v577 = vsub.f32 %v555, %v572
    %v578 = vmul.f32 %v573, 1.442695
    %v579 = vpow.pop %v578
    %v580 = vmul.f32 %v574, 1.442695
    %v581 = vpow.pop %v580
    %v582 = vmul.f32 %v575, 1.442695
    %v583 = vpow.pop %v582
    %v584 = vmul.f32 %v576, 1.442695
    %v585 = vpow.pop %v584
    %v586 = vmul.f32 %v577, 1.442695
    %v587 = vpow.pop %v586
    %v588 = vsel %vm556, %v579, 0.0
    %589 = vadd.xlane.f32.xlu0 %v588
    %v590 = vpop.xlane.xlu0 %589
    %v591 = vsel %vm556, %v581, 0.0
    %592 = vadd.xlane.f32.xlu0 %v591
    %v593 = vpop.xlane.xlu0 %592
    %v594 = vsel %vm556, %v583, 0.0
    %595 = vadd.xlane.f32.xlu0 %v594
    %v596 = vpop.xlane.xlu0 %595
    %v597 = vsel %vm556, %v585, 0.0
    %598 = vadd.xlane.f32.xlu0 %v597
    %v599 = vpop.xlane.xlu0 %598
    %v600 = vsel %vm569, %v587, 0.0
    %601 = vadd.xlane.f32.xlu0 %v600
    %v602 = vpop.xlane.xlu0 %601
    %603 = vrot.lane.b32.xlu0 %v392, 64
    %v604 = vpop.permute.xlu0 %603
    %605 = vrot.lane.b32.xlu0 %v397, 64
    %v606 = vpop.permute.xlu0 %605
    %607 = vrot.lane.b32.xlu0 %v402, 64
    %v608 = vpop.permute.xlu0 %607
    %609 = vrot.lane.b32.xlu0 %v407, 64
    %v610 = vpop.permute.xlu0 %609
    %611 = vrot.lane.b32.xlu0 %v412, 64
    %v612 = vpop.permute.xlu0 %611
    %v618 = vsel %vm556, %v579, 0
    %v621 = vsel %vm556, %v581, 0
    %v624 = vsel %vm556, %v583, 0
    %v627 = vsel %vm556, %v585, 0
    %v630 = vsel %vm556, %v587, 0
    %v632 = vsel %vm64, %v612, 0
    %634 = vmatprep.subr.mxu0 0.0
    %635 = vmatpush1.msra.mxu0 %v604
    %636 = vmatprep.subr.mxu0 0.0
    %637 = vmatpush1.msra.mxu0 %v606
    %638 = vmatprep.subr.mxu0 0.0
    %639 = vmatpush1.msra.mxu0 %v608
    %640 = vmatprep.subr.mxu0 0.0
    %641 = vmatpush1.msra.mxu0 %v610
    %642 = vmatprep.subr.mxu0 0.0
    %643 = vmatpush1.msra.mxu0 %v632
    %644 = vmatprep.subr.mxu0 0.0
    %645 = vmatpush1.msra.mxu0 0.0
    %646 = vmatprep.subr.mxu0 0.0
    %647 = vmatpush1.msra.mxu0 0.0
    %648 = vmatprep.subr.mxu0 0.0
    %649 = vmatpush1.msra.mxu0 0.0
    %650 = vmatprep.subr.mxu0 0.0
    %651 = vmatpush1.msra.mxu0 0.0
    %652 = vmatprep.subr.mxu0 0.0
    %653 = vmatpush1.msra.mxu0 0.0
    %654 = vmatprep.subr.mxu0 0.0
    %655 = vmatpush1.msra.mxu0 0.0
    %656 = vmatprep.subr.mxu0 0.0
    %657 = vmatpush1.msra.mxu0 0.0
    %658 = vmatprep.subr.mxu0 0.0
    %659 = vmatpush1.msra.mxu0 0.0
    %660 = vmatprep.subr.mxu0 0.0
    %661 = vmatpush1.msra.mxu0 0.0
    %662 = vmatprep.subr.mxu0 0.0
    %663 = vmatpush1.msra.mxu0 0.0
    %664 = vmatprep.subr.mxu0 0.0
    %665 = vmatpush1.msra.mxu0 0.0
    %666 = vmatprep.subr.mxu0 0.0
    %667 = vmatpush1.msra.mxu0 0.0
    %668 = vmatprep.subr.mxu0 0.0
    %669 = vmatpush1.msra.mxu0 0.0
    %670 = vmatprep.subr.mxu0 0.0
    %671 = vmatpush1.msra.mxu0 0.0
    %672 = vmatprep.subr.mxu0 0.0
    %673 = vmatpush1.msra.mxu0 0.0
    %674 = vmatprep.subr.mxu0 0.0
    %675 = vmatpush1.msra.mxu0 0.0
    %676 = vmatprep.subr.mxu0 0.0
    %677 = vmatpush1.msra.mxu0 0.0
    %678 = vmatprep.subr.mxu0 0.0
    %679 = vmatpush1.msra.mxu0 0.0
    %680 = vmatprep.subr.mxu0 0.0
    %681 = vmatpush1.msra.mxu0 0.0
    %682 = vmatprep.subr.mxu0 0.0
    %683 = vmatpush1.msra.mxu0 0.0
    %684 = vmatprep.subr.mxu0 0.0
    %685 = vmatpush1.msra.mxu0 0.0
    %686 = vmatprep.subr.mxu0 0.0
    %687 = vmatpush1.msra.mxu0 0.0
    %688 = vmatprep.subr.mxu0 0.0
    %689 = vmatpush1.msra.mxu0 0.0
    %690 = vmatprep.subr.mxu0 0.0
    %691 = vmatpush1.msra.mxu0 0.0
    %692 = vmatprep.subr.mxu0 0.0
    %693 = vmatpush1.msra.mxu0 0.0
    %694 = vmatprep.subr.mxu0 0.0
    %695 = vmatpush1.msra.mxu0 0.0
    %696 = vmatprep.subr.mxu0 0.0
    %697 = vmatpush1.msra.mxu0 0.0
    %698 = vmatprep.mubr.f32.mxu0 0.0
    %699 = vmatmul.mubr.f32.gmra.mrb[0].mxu0 %v618
    %v700 = vpop.f32.mrb[0].mxu0
    %v701 = vadd.f32 0.0, %v700
    %v702 = vpop.f32.mrb[0].mxu0
    %703 = vmatprep.mubr.f32.mxu0 0.0
    %704 = vmatmul.mubr.f32.gmra.mrb[0].mxu0 %v621
    %v705 = vpop.f32.mrb[0].mxu0
    %v706 = vadd.f32 0.0, %v705
    %v707 = vpop.f32.mrb[0].mxu0
    %708 = vmatprep.mubr.f32.mxu0 0.0
    %709 = vmatmul.mubr.f32.gmra.mrb[0].mxu0 %v624
    %v710 = vpop.f32.mrb[0].mxu0
    %v711 = vadd.f32 0.0, %v710
    %v712 = vpop.f32.mrb[0].mxu0
    %713 = vmatprep.mubr.f32.mxu0 0.0
    %714 = vmatmul.mubr.f32.gmra.mrb[0].mxu0 %v627
    %v715 = vpop.f32.mrb[0].mxu0
    %v716 = vadd.f32 0.0, %v715
    %v717 = vpop.f32.mrb[0].mxu0
    %718 = vmatprep.mubr.f32.mxu0 0.0
    %719 = vmatmul.mubr.f32.gmra.mrb[0].mxu0 %v630
    %v720 = vpop.f32.mrb[0].mxu0
    %v721 = vadd.f32 0.0, %v720
    %v722 = vpop.f32.mrb[0].mxu0
    %723 = vdwg.mxu0
    %v724 = vrcp.pop %v590
    %v725 = vrcp.pop %v593
    %v726 = vrcp.pop %v596
    %v727 = vrcp.pop %v599
    %v728 = vrcp.pop %v602
    %v729 = vmul.f32 %v701, %v724
    %v730 = vmul.f32 %v706, %v725
    %v731 = vmul.f32 %v711, %v726
    %v732 = vmul.f32 %v716, %v727
    %v733 = vmul.f32 %v721, %v728
    %v734 = vld [vmem:[%s4 + $0x8] sm:$0xff]
    %v735 = vld [vmem:[%s4 + $0x28] sm:$0xff]
    %v736 = vld [vmem:[%s4 + $0x48] sm:$0xff]
    %v737 = vld [vmem:[%s4 + $0x68] sm:$0xff]
    %v738 = vld [vmem:[%s6] sm:$0x1]
    %v739 = vlaneseq
    %v740 = vshrl.u32 %v739, 7
    %v741 = vsub.s32 0, %v740
    %v742 = vrot.slane %v738, %v741
    %v744 = vsel %vm309, %v729, 0
    %v747 = vsel %vm309, %v730, 0
    %v750 = vsel %vm309, %v731, 0
    %v753 = vsel %vm309, %v732, 0
    %v756 = vsel %vm309, %v733, 0
    %758 = vmatprep.subr.mxu0 0.0
    %759 = vmatpush1.msra.mxu0 %v734
    %760 = vmatprep.subr.mxu0 0.0
    %761 = vmatpush1.msra.mxu0 %v735
    %762 = vmatprep.subr.mxu0 0.0
    %763 = vmatpush1.msra.mxu0 %v736
    %764 = vmatprep.subr.mxu0 0.0
    %765 = vmatpush1.msra.mxu0 %v737
    %766 = vmatprep.subr.mxu0 0.0
    %767 = vmatpush1.msra.mxu0 0.0
    %768 = vmatprep.subr.mxu0 0.0
    %769 = vmatpush1.msra.mxu0 0.0
    %770 = vmatprep.subr.mxu0 0.0
    %771 = vmatpush1.msra.mxu0 0.0
    %772 = vmatprep.subr.mxu0 0.0
    %773 = vmatpush1.msra.mxu0 0.0
    %774 = vmatprep.subr.mxu0 0.0
    %775 = vmatpush1.msra.mxu0 0.0
    %776 = vmatprep.subr.mxu0 0.0
    %777 = vmatpush1.msra.mxu0 0.0
    %778 = vmatprep.subr.mxu0 0.0
    %779 = vmatpush1.msra.mxu0 0.0
    %780 = vmatprep.subr.mxu0 0.0
    %781 = vmatpush1.msra.mxu0 0.0
    %782 = vmatprep.subr.mxu0 0.0
    %783 = vmatpush1.msra.mxu0 0.0
    %784 = vmatprep.subr.mxu0 0.0
    %785 = vmatpush1.msra.mxu0 0.0
    %786 = vmatprep.subr.mxu0 0.0
    %787 = vmatpush1.msra.mxu0 0.0
    %788 = vmatprep.subr.mxu0 0.0
    %789 = vmatpush1.msra.mxu0 0.0
    %790 = vmatprep.subr.mxu0 0.0
    %791 = vmatpush1.msra.mxu0 0.0
    %792 = vmatprep.subr.mxu0 0.0
    %793 = vmatpush1.msra.mxu0 0.0
    %794 = vmatprep.subr.mxu0 0.0
    %795 = vmatpush1.msra.mxu0 0.0
    %796 = vmatprep.subr.mxu0 0.0
    %797 = vmatpush1.msra.mxu0 0.0
    %798 = vmatprep.subr.mxu0 0.0
    %799 = vmatpush1.msra.mxu0 0.0
    %800 = vmatprep.subr.mxu0 0.0
    %801 = vmatpush1.msra.mxu0 0.0
    %802 = vmatprep.subr.mxu0 0.0
    %803 = vmatpush1.msra.mxu0 0.0
    %804 = vmatprep.subr.mxu0 0.0
    %805 = vmatpush1.msra.mxu0 0.0
    %806 = vmatprep.subr.mxu0 0.0
    %807 = vmatpush1.msra.mxu0 0.0
    %808 = vmatprep.subr.mxu0 0.0
    %809 = vmatpush1.msra.mxu0 0.0
    %810 = vmatprep.subr.mxu0 0.0
    %811 = vmatpush1.msra.mxu0 0.0
    %812 = vmatprep.subr.mxu0 0.0
    %813 = vmatpush1.msra.mxu0 0.0
    %814 = vmatprep.subr.mxu0 0.0
    %815 = vmatpush1.msra.mxu0 0.0
    %816 = vmatprep.subr.mxu0 0.0
    %817 = vmatpush1.msra.mxu0 0.0
    %818 = vmatprep.subr.mxu0 0.0
    %819 = vmatpush1.msra.mxu0 0.0
    %820 = vmatprep.subr.mxu0 0.0
    %821 = vmatpush1.msra.mxu0 0.0
    %822 = vmatprep.mubr.f32.mxu0 0.0
    %823 = vmatmul.mubr.f32.gmra.mrb[0].mxu0 %v744
    %v824 = vpop.f32.mrb[0].mxu0
    %v825 = vadd.f32 %v742, %v824
    %v826 = vpop.f32.mrb[0].mxu0
    %827 = vmatprep.mubr.f32.mxu0 0.0
    %828 = vmatmul.mubr.f32.gmra.mrb[0].mxu0 %v747
    %v829 = vpop.f32.mrb[0].mxu0
    %v830 = vadd.f32 %v742, %v829
    %v831 = vpop.f32.mrb[0].mxu0
    %832 = vmatprep.mubr.f32.mxu0 0.0
    %833 = vmatmul.mubr.f32.gmra.mrb[0].mxu0 %v750
    %v834 = vpop.f32.mrb[0].mxu0
    %v835 = vadd.f32 %v742, %v834
    %v836 = vpop.f32.mrb[0].mxu0
    %837 = vmatprep.mubr.f32.mxu0 0.0
    %838 = vmatmul.mubr.f32.gmra.mrb[0].mxu0 %v753
    %v839 = vpop.f32.mrb[0].mxu0
    %v840 = vadd.f32 %v742, %v839
    %v841 = vpop.f32.mrb[0].mxu0
    %842 = vmatprep.mubr.f32.mxu0 0.0
    %843 = vmatmul.mubr.f32.gmra.mrb[0].mxu0 %v756
    %v844 = vpop.f32.mrb[0].mxu0
    %v845 = vadd.f32 %v742, %v844
    %v846 = vpop.f32.mrb[0].mxu0
    %847 = vdwg.mxu0
    %v848 = vadd.f32 %v271, %v825
    %v849 = vadd.f32 %v272, %v830
    %v850 = vadd.f32 %v273, %v835
    %v851 = vadd.f32 %v274, %v840
    %v852 = vadd.f32 %v275, %v845
    %v853 = vld [vmem:[%s6 + $0x1] sm:$0x1]
    %v854 = vld [vmem:[%s6 + $0x2] sm:$0x1]
    %v855 = vsel %vm309, %v848, 0.0
    %856 = vadd.xlane.f32.xlu0 %v855
    %v857 = vpop.xlane.xlu0 %856
    %v858 = vsel %vm309, %v849, 0.0
    %859 = vadd.xlane.f32.xlu0 %v858
    %v860 = vpop.xlane.xlu0 %859
    %v861 = vsel %vm309, %v850, 0.0
    %862 = vadd.xlane.f32.xlu0 %v861
    %v863 = vpop.xlane.xlu0 %862
    %v864 = vsel %vm309, %v851, 0.0
    %865 = vadd.xlane.f32.xlu0 %v864
    %v866 = vpop.xlane.xlu0 %865
    %vm867 = vcmask 254976
    %v868 = vsel %vm867, %v852, 0.0
    %869 = vadd.xlane.f32.xlu0 %v868
    %v870 = vpop.xlane.xlu0 %869
    %v871 = vrcp.pop 32.0
    %v872 = vmul.f32 %v857, %v871
    %v873 = vmul.f32 %v860, %v871
    %v874 = vmul.f32 %v863, %v871
    %v875 = vmul.f32 %v866, %v871
    %v876 = vmul.f32 %v870, %v871
    %v877 = vsub.f32 %v848, %v872
    %v878 = vsub.f32 %v849, %v873
    %v879 = vsub.f32 %v850, %v874
    %v880 = vsub.f32 %v851, %v875
    %v881 = vsub.f32 %v852, %v876
    %v882 = vmul.f32 %v877, %v877
    %v883 = vmul.f32 %v878, %v878
    %v884 = vmul.f32 %v879, %v879
    %v885 = vmul.f32 %v880, %v880
    %v886 = vmul.f32 %v881, %v881
    %v887 = vsel %vm309, %v882, 0.0
    %888 = vadd.xlane.f32.xlu0 %v887
    %v889 = vpop.xlane.xlu0 %888
    %v890 = vsel %vm309, %v883, 0.0
    %891 = vadd.xlane.f32.xlu0 %v890
    %v892 = vpop.xlane.xlu0 %891
    %v893 = vsel %vm309, %v884, 0.0
    %894 = vadd.xlane.f32.xlu0 %v893
    %v895 = vpop.xlane.xlu0 %894
    %v896 = vsel %vm309, %v885, 0.0
    %897 = vadd.xlane.f32.xlu0 %v896
    %v898 = vpop.xlane.xlu0 %897
    %v899 = vsel %vm867, %v886, 0.0
    %900 = vadd.xlane.f32.xlu0 %v899
    %v901 = vpop.xlane.xlu0 %900
    %v902 = vmul.f32 %v889, %v871
    %v903 = vmul.f32 %v892, %v871
    %v904 = vmul.f32 %v895, %v871
    %v905 = vmul.f32 %v898, %v871
    %v906 = vmul.f32 %v901, %v871
    %v907 = vadd.f32 %v902, 1e-05
    %v908 = vadd.f32 %v903, 1e-05
    %v909 = vadd.f32 %v904, 1e-05
    %v910 = vadd.f32 %v905, 1e-05
    %v911 = vadd.f32 %v906, 1e-05
    %v912 = vrsqrt.pop %v907
    %v913 = vrsqrt.pop %v908
    %v914 = vrsqrt.pop %v909
    %v915 = vrsqrt.pop %v910
    %v916 = vrsqrt.pop %v911
    %v917 = vmul.f32 %v877, %v912
    %v918 = vmul.f32 %v878, %v913
    %v919 = vmul.f32 %v879, %v914
    %v920 = vmul.f32 %v880, %v915
    %v921 = vmul.f32 %v881, %v916
    %v922 = vlaneseq
    %v923 = vshrl.u32 %v922, 7
    %v924 = vsub.s32 0, %v923
    %v925 = vrot.slane %v853, %v924
    %v926 = vmul.f32 %v917, %v925
    %v927 = vmul.f32 %v918, %v925
    %v928 = vmul.f32 %v919, %v925
    %v929 = vmul.f32 %v920, %v925
    %v930 = vmul.f32 %v921, %v925
    %v931 = vlaneseq
    %v932 = vshrl.u32 %v931, 7
    %v933 = vsub.s32 0, %v932
    %v934 = vrot.slane %v854, %v933
    %v935 = vadd.f32 %v926, %v934
    %v936 = vadd.f32 %v927, %v934
    %v937 = vadd.f32 %v928, %v934
    %v938 = vadd.f32 %v929, %v934
    %v939 = vadd.f32 %v930, %v934
    %v940 = vld [vmem:[%s4 + $0x10] sm:$0xff]
    %v941 = vld [vmem:[%s4 + $0x30] sm:$0xff]
    %v942 = vld [vmem:[%s4 + $0x50] sm:$0xff]
    %v943 = vld [vmem:[%s4 + $0x70] sm:$0xff]
    %v944 = vld [vmem:[%s5 + $0x88] sm:$0xff]
    %v945 = vld [vmem:[%s5 + $0x90] sm:$0xff]
    %v946 = vld [vmem:[%s5 + $0x98] sm:$0xff]
    %v947 = vld [vmem:[%s5 + $0xa0] sm:$0xff]
    %v948 = vld [vmem:[%s5 + $0xa8] sm:$0xff]
    %v949 = vld [vmem:[%s5 + $0xb0] sm:$0xff]
    %v950 = vld [vmem:[%s5 + $0xb8] sm:$0xff]
    %v951 = vld [vmem:[%s5 + $0xc0] sm:$0xff]
    %v952 = vld [vmem:[%s6 + $0x9] sm:$0x1]
    %v953 = vlaneseq
    %v954 = vshrl.u32 %v953, 7
    %v955 = vsub.s32 0, %v954
    %v956 = vrot.slane %v952, %v955
    %v958 = vsel %vm309, %v935, 0
    %v961 = vsel %vm309, %v936, 0
    %v964 = vsel %vm309, %v937, 0
    %v967 = vsel %vm309, %v938, 0
    %v970 = vsel %vm309, %v939, 0
    %972 = vmatprep.subr.mxu0 0.0
    %973 = vmatpush1.msra.mxu0 %v940
    %974 = vmatprep.subr.mxu0 0.0
    %975 = vmatpush1.msra.mxu0 %v941
    %976 = vmatprep.subr.mxu0 0.0
    %977 = vmatpush1.msra.mxu0 %v942
    %978 = vmatprep.subr.mxu0 0.0
    %979 = vmatpush1.msra.mxu0 %v943
    %980 = vmatprep.subr.mxu0 0.0
    %981 = vmatpush1.msra.mxu0 0.0
    %982 = vmatprep.subr.mxu0 0.0
    %983 = vmatpush1.msra.mxu0 0.0
    %984 = vmatprep.subr.mxu0 0.0
    %985 = vmatpush1.msra.mxu0 0.0
    %986 = vmatprep.subr.mxu0 0.0
    %987 = vmatpush1.msra.mxu0 0.0
    %988 = vmatprep.subr.mxu0 0.0
    %989 = vmatpush1.msra.mxu0 0.0
    %990 = vmatprep.subr.mxu0 0.0
    %991 = vmatpush1.msra.mxu0 0.0
    %992 = vmatprep.subr.mxu0 0.0
    %993 = vmatpush1.msra.mxu0 0.0
    %994 = vmatprep.subr.mxu0 0.0
    %995 = vmatpush1.msra.mxu0 0.0
    %996 = vmatprep.subr.mxu0 0.0
    %997 = vmatpush1.msra.mxu0 0.0
    %998 = vmatprep.subr.mxu0 0.0
    %999 = vmatpush1.msra.mxu0 0.0
    %1000 = vmatprep.subr.mxu0 0.0
    %1001 = vmatpush1.msra.mxu0 0.0
    %1002 = vmatprep.subr.mxu0 0.0
    %1003 = vmatpush1.msra.mxu0 0.0
    %1004 = vmatprep.subr.mxu0 0.0
    %1005 = vmatpush1.msra.mxu0 0.0
    %1006 = vmatprep.subr.mxu0 0.0
    %1007 = vmatpush1.msra.mxu0 0.0
    %1008 = vmatprep.subr.mxu0 0.0
    %1009 = vmatpush1.msra.mxu0 0.0
    %1010 = vmatprep.subr.mxu0 0.0
    %1011 = vmatpush1.msra.mxu0 0.0
    %1012 = vmatprep.subr.mxu0 0.0
    %1013 = vmatpush1.msra.mxu0 0.0
    %1014 = vmatprep.subr.mxu0 0.0
    %1015 = vmatpush1.msra.mxu0 0.0
    %1016 = vmatprep.subr.mxu0 0.0
    %1017 = vmatpush1.msra.mxu0 0.0
    %1018 = vmatprep.subr.mxu0 0.0
    %1019 = vmatpush1.msra.mxu0 0.0
    %1020 = vmatprep.subr.mxu0 0.0
    %1021 = vmatpush1.msra.mxu0 0.0
    %1022 = vmatprep.subr.mxu0 0.0
    %1023 = vmatpush1.msra.mxu0 0.0
    %1024 = vmatprep.subr.mxu0 0.0
    %1025 = vmatpush1.msra.mxu0 0.0
    %1026 = vmatprep.subr.mxu0 0.0
    %1027 = vmatpush1.msra.mxu0 0.0
    %1028 = vmatprep.subr.mxu0 0.0
    %1029 = vmatpush1.msra.mxu0 0.0
    %1030 = vmatprep.subr.mxu0 0.0
    %1031 = vmatpush1.msra.mxu0 0.0
    %1032 = vmatprep.subr.mxu0 0.0
    %1033 = vmatpush1.msra.mxu0 0.0
    %1034 = vmatprep.subr.mxu0 0.0
    %1035 = vmatpush1.msra.mxu0 0.0
    %1036 = vmatprep.mubr.f32.mxu0 0.0
    %1037 = vmatmul.mubr.f32.gmra.mrb[0].mxu0 %v958
    %v1038 = vpop.f32.mrb[0].mxu0
    %v1039 = vadd.f32 %v956, %v1038
    %v1040 = vpop.f32.mrb[0].mxu0
    %1041 = vmatprep.mubr.f32.mxu0 0.0
    %1042 = vmatmul.mubr.f32.gmra.mrb[0].mxu0 %v961
    %v1043 = vpop.f32.mrb[0].mxu0
    %v1044 = vadd.f32 %v956, %v1043
    %v1045 = vpop.f32.mrb[0].mxu0
    %1046 = vmatprep.mubr.f32.mxu0 0.0
    %1047 = vmatmul.mubr.f32.gmra.mrb[0].mxu0 %v964
    %v1048 = vpop.f32.mrb[0].mxu0
    %v1049 = vadd.f32 %v956, %v1048
    %v1050 = vpop.f32.mrb[0].mxu0
    %1051 = vmatprep.mubr.f32.mxu0 0.0
    %1052 = vmatmul.mubr.f32.gmra.mrb[0].mxu0 %v967
    %v1053 = vpop.f32.mrb[0].mxu0
    %v1054 = vadd.f32 %v956, %v1053
    %v1055 = vpop.f32.mrb[0].mxu0
    %1056 = vmatprep.mubr.f32.mxu0 0.0
    %1057 = vmatmul.mubr.f32.gmra.mrb[0].mxu0 %v970
    %v1058 = vpop.f32.mrb[0].mxu0
    %v1059 = vadd.f32 %v956, %v1058
    %v1060 = vpop.f32.mrb[0].mxu0
    %1061 = vdwg.mxu0
    %v1062 = vmul.f32 %v1039, %v1039
    %v1063 = vmul.f32 %v1044, %v1044
    %v1064 = vmul.f32 %v1049, %v1049
    %v1065 = vmul.f32 %v1054, %v1054
    %v1066 = vmul.f32 %v1059, %v1059
    %v1067 = vmul.f32 %v1039, %v1062
    %v1068 = vmul.f32 %v1044, %v1063
    %v1069 = vmul.f32 %v1049, %v1064
    %v1070 = vmul.f32 %v1054, %v1065
    %v1071 = vmul.f32 %v1059, %v1066
    %v1072 = vmul.f32 %v1067, 0.044715
    %v1073 = vmul.f32 %v1068, 0.044715
    %v1074 = vmul.f32 %v1069, 0.044715
    %v1075 = vmul.f32 %v1070, 0.044715
    %v1076 = vmul.f32 %v1071, 0.044715
    %v1077 = vadd.f32 %v1039, %v1072
    %v1078 = vadd.f32 %v1044, %v1073
    %v1079 = vadd.f32 %v1049, %v1074
    %v1080 = vadd.f32 %v1054, %v1075
    %v1081 = vadd.f32 %v1059, %v1076
    %v1082 = vmul.f32 %v1077, 0.7978846
    %v1083 = vmul.f32 %v1078, 0.7978846
    %v1084 = vmul.f32 %v1079, 0.7978846
    %v1085 = vmul.f32 %v1080, 0.7978846
    %v1086 = vmul.f32 %v1081, 0.7978846
    %v1087 = vtanh.pop %v1082
    %v1088 = vtanh.pop %v1083
    %v1089 = vtanh.pop %v1084
    %v1090 = vtanh.pop %v1085
    %v1091 = vtanh.pop %v1086
    %v1092 = vadd.f32 %v1087, 1.0
    %v1093 = vadd.f32 %v1088, 1.0
    %v1094 = vadd.f32 %v1089, 1.0
    %v1095 = vadd.f32 %v1090, 1.0
    %v1096 = vadd.f32 %v1091, 1.0
    %v1097 = vmul.f32 %v1092, 0.5
    %v1098 = vmul.f32 %v1093, 0.5
    %v1099 = vmul.f32 %v1094, 0.5
    %v1100 = vmul.f32 %v1095, 0.5
    %v1101 = vmul.f32 %v1096, 0.5
    %v1102 = vmul.f32 %v1039, %v1097
    %v1103 = vmul.f32 %v1044, %v1098
    %v1104 = vmul.f32 %v1049, %v1099
    %v1105 = vmul.f32 %v1054, %v1100
    %v1106 = vmul.f32 %v1059, %v1101
    %v1107 = vld [vmem:[%s6 + $0x3] sm:$0x1]
    %v1108 = vlaneseq
    %v1109 = vshrl.u32 %v1108, 7
    %v1110 = vsub.s32 0, %v1109
    %v1111 = vrot.slane %v1107, %v1110
    %vm1112 = vcmask 523264
    %v1114 = vsel %vm1112, %v1102, 0
    %v1117 = vsel %vm1112, %v1103, 0
    %v1120 = vsel %vm1112, %v1104, 0
    %v1123 = vsel %vm1112, %v1105, 0
    %v1126 = vsel %vm1112, %v1106, 0
    %1128 = vmatprep.subr.mxu0 0.0
    %1129 = vmatpush1.msra.mxu0 %v944
    %1130 = vmatprep.subr.mxu0 0.0
    %1131 = vmatpush1.msra.mxu0 %v945
    %1132 = vmatprep.subr.mxu0 0.0
    %1133 = vmatpush1.msra.mxu0 %v946
    %1134 = vmatprep.subr.mxu0 0.0
    %1135 = vmatpush1.msra.mxu0 %v947
    %1136 = vmatprep.subr.mxu0 0.0
    %1137 = vmatpush1.msra.mxu0 %v948
    %1138 = vmatprep.subr.mxu0 0.0
    %1139 = vmatpush1.msra.mxu0 %v949
    %1140 = vmatprep.subr.mxu0 0.0
    %1141 = vmatpush1.msra.mxu0 %v950
    %1142 = vmatprep.subr.mxu0 0.0
    %1143 = vmatpush1.msra.mxu0 %v951
    %1144 = vmatprep.subr.mxu0 0.0
    %1145 = vmatpush1.msra.mxu0 0.0
    %1146 = vmatprep.subr.mxu0 0.0
    %1147 = vmatpush1.msra.mxu0 0.0
    %1148 = vmatprep.subr.mxu0 0.0
    %1149 = vmatpush1.msra.mxu0 0.0
    %1150 = vmatprep.subr.mxu0 0.0
    %1151 = vmatpush1.msra.mxu0 0.0
    %1152 = vmatprep.subr.mxu0 0.0
    %1153 = vmatpush1.msra.mxu0 0.0
    %1154 = vmatprep.subr.mxu0 0.0
    %1155 = vmatpush1.msra.mxu0 0.0
    %1156 = vmatprep.subr.mxu0 0.0
    %1157 = vmatpush1.msra.mxu0 0.0
    %1158 = vmatprep.subr.mxu0 0.0
    %1159 = vmatpush1.msra.mxu0 0.0
    %1160 = vmatprep.subr.mxu0 0.0
    %1161 = vmatpush1.msra.mxu0 0.0
    %1162 = vmatprep.subr.mxu0 0.0
    %1163 = vmatpush1.msra.mxu0 0.0
    %1164 = vmatprep.subr.mxu0 0.0
    %1165 = vmatpush1.msra.mxu0 0.0
    %1166 = vmatprep.subr.mxu0 0.0
    %1167 = vmatpush1.msra.mxu0 0.0
    %1168 = vmatprep.subr.mxu0 0.0
    %1169 = vmatpush1.msra.mxu0 0.0
    %1170 = vmatprep.subr.mxu0 0.0
    %1171 = vmatpush1.msra.mxu0 0.0
    %1172 = vmatprep.subr.mxu0 0.0
    %1173 = vmatpush1.msra.mxu0 0.0
    %1174 = vmatprep.subr.mxu0 0.0
    %1175 = vmatpush1.msra.mxu0 0.0
    %1176 = vmatprep.subr.mxu0 0.0
    %1177 = vmatpush1.msra.mxu0 0.0
    %1178 = vmatprep.subr.mxu0 0.0
    %1179 = vmatpush1.msra.mxu0 0.0
    %1180 = vmatprep.subr.mxu0 0.0
    %1181 = vmatpush1.msra.mxu0 0.0
    %1182 = vmatprep.subr.mxu0 0.0
    %1183 = vmatpush1.msra.mxu0 0.0
    %1184 = vmatprep.subr.mxu0 0.0
    %1185 = vmatpush1.msra.mxu0 0.0
    %1186 = vmatprep.subr.mxu0 0.0
    %1187 = vmatpush1.msra.mxu0 0.0
    %1188 = vmatprep.subr.mxu0 0.0
    %1189 = vmatpush1.msra.mxu0 0.0
    %1190 = vmatprep.subr.mxu0 0.0
    %1191 = vmatpush1.msra.mxu0 0.0
    %1192 = vmatprep.mubr.f32.mxu0 0.0
    %1193 = vmatmul.mubr.f32.gmra.mrb[0].mxu0 %v1114
    %v1194 = vpop.f32.mrb[0].mxu0
    %v1195 = vadd.f32 %v1111, %v1194
    %v1196 = vpop.f32.mrb[0].mxu0
    %1197 = vmatprep.mubr.f32.mxu0 0.0
    %1198 = vmatmul.mubr.f32.gmra.mrb[0].mxu0 %v1117
    %v1199 = vpop.f32.mrb[0].mxu0
    %v1200 = vadd.f32 %v1111, %v1199
    %v1201 = vpop.f32.mrb[0].mxu0
    %1202 = vmatprep.mubr.f32.mxu0 0.0
    %1203 = vmatmul.mubr.f32.gmra.mrb[0].mxu0 %v1120
    %v1204 = vpop.f32.mrb[0].mxu0
    %v1205 = vadd.f32 %v1111, %v1204
    %v1206 = vpop.f32.mrb[0].mxu0
    %1207 = vmatprep.mubr.f32.mxu0 0.0
    %1208 = vmatmul.mubr.f32.gmra.mrb[0].mxu0 %v1123
    %v1209 = vpop.f32.mrb[0].mxu0
    %v1210 = vadd.f32 %v1111, %v1209
    %v1211 = vpop.f32.mrb[0].mxu0
    %1212 = vmatprep.mubr.f32.mxu0 0.0
    %1213 = vmatmul.mubr.f32.gmra.mrb[0].mxu0 %v1126
    %v1214 = vpop.f32.mrb[0].mxu0
    %v1215 = vadd.f32 %v1111, %v1214
    %v1216 = vpop.f32.mrb[0].mxu0
    %1217 = vdwg.mxu0
    %v1218 = vadd.f32 %v935, %v1195
    %v1219 = vadd.f32 %v936, %v1200
    %v1220 = vadd.f32 %v937, %v1205
    %v1221 = vadd.f32 %v938, %v1210
    %v1222 = vadd.f32 %v939, %v1215
    %v1223 = vld [vmem:[%s6 + $0x4] sm:$0x1]
    %v1224 = vld [vmem:[%s6 + $0x5] sm:$0x1]
    %v1225 = vsel %vm309, %v1218, 0.0
    %1226 = vadd.xlane.f32.xlu0 %v1225
    %v1227 = vpop.xlane.xlu0 %1226
    %v1228 = vsel %vm309, %v1219, 0.0
    %1229 = vadd.xlane.f32.xlu0 %v1228
    %v1230 = vpop.xlane.xlu0 %1229
    %v1231 = vsel %vm309, %v1220, 0.0
    %1232 = vadd.xlane.f32.xlu0 %v1231
    %v1233 = vpop.xlane.xlu0 %1232
    %v1234 = vsel %vm309, %v1221, 0.0
    %1235 = vadd.xlane.f32.xlu0 %v1234
    %v1236 = vpop.xlane.xlu0 %1235
    %v1237 = vsel %vm867, %v1222, 0.0
    %1238 = vadd.xlane.f32.xlu0 %v1237
    %v1239 = vpop.xlane.xlu0 %1238
    %v1240 = vmul.f32 %v1227, %v871
    %v1241 = vmul.f32 %v1230, %v871
    %v1242 = vmul.f32 %v1233, %v871
    %v1243 = vmul.f32 %v1236, %v871
    %v1244 = vmul.f32 %v1239, %v871
    %v1245 = vsub.f32 %v1218, %v1240
    %v1246 = vsub.f32 %v1219, %v1241
    %v1247 = vsub.f32 %v1220, %v1242
    %v1248 = vsub.f32 %v1221, %v1243
    %v1249 = vsub.f32 %v1222, %v1244
    %v1250 = vmul.f32 %v1245, %v1245
    %v1251 = vmul.f32 %v1246, %v1246
    %v1252 = vmul.f32 %v1247, %v1247
    %v1253 = vmul.f32 %v1248, %v1248
    %v1254 = vmul.f32 %v1249, %v1249
    %v1255 = vsel %vm309, %v1250, 0.0
    %1256 = vadd.xlane.f32.xlu0 %v1255
    %v1257 = vpop.xlane.xlu0 %1256
    %v1258 = vsel %vm309, %v1251, 0.0
    %1259 = vadd.xlane.f32.xlu0 %v1258
    %v1260 = vpop.xlane.xlu0 %1259
    %v1261 = vsel %vm309, %v1252, 0.0
    %1262 = vadd.xlane.f32.xlu0 %v1261
    %v1263 = vpop.xlane.xlu0 %1262
    %v1264 = vsel %vm309, %v1253, 0.0
    %1265 = vadd.xlane.f32.xlu0 %v1264
    %v1266 = vpop.xlane.xlu0 %1265
    %v1267 = vsel %vm867, %v1254, 0.0
    %1268 = vadd.xlane.f32.xlu0 %v1267
    %v1269 = vpop.xlane.xlu0 %1268
    %v1270 = vmul.f32 %v1257, %v871
    %v1271 = vmul.f32 %v1260, %v871
    %v1272 = vmul.f32 %v1263, %v871
    %v1273 = vmul.f32 %v1266, %v871
    %v1274 = vmul.f32 %v1269, %v871
    %v1275 = vadd.f32 %v1270, 1e-05
    %v1276 = vadd.f32 %v1271, 1e-05
    %v1277 = vadd.f32 %v1272, 1e-05
    %v1278 = vadd.f32 %v1273, 1e-05
    %v1279 = vadd.f32 %v1274, 1e-05
    %v1280 = vrsqrt.pop %v1275
    %v1281 = vrsqrt.pop %v1276
    %v1282 = vrsqrt.pop %v1277
    %v1283 = vrsqrt.pop %v1278
    %v1284 = vrsqrt.pop %v1279
    %v1285 = vmul.f32 %v1245, %v1280
    %v1286 = vmul.f32 %v1246, %v1281
    %v1287 = vmul.f32 %v1247, %v1282
    %v1288 = vmul.f32 %v1248, %v1283
    %v1289 = vmul.f32 %v1249, %v1284
    %v1290 = vlaneseq
    %v1291 = vshrl.u32 %v1290, 7
    %v1292 = vsub.s32 0, %v1291
    %v1293 = vrot.slane %v1223, %v1292
    %v1294 = vmul.f32 %v1285, %v1293
    %v1295 = vmul.f32 %v1286, %v1293
    %v1296 = vmul.f32 %v1287, %v1293
    %v1297 = vmul.f32 %v1288, %v1293
    %v1298 = vmul.f32 %v1289, %v1293
    %v1299 = vlaneseq
    %v1300 = vshrl.u32 %v1299, 7
    %v1301 = vsub.s32 0, %v1300
    %v1302 = vrot.slane %v1224, %v1301
    %v1303 = vadd.f32 %v1294, %v1302
    %v1304 = vadd.f32 %v1295, %v1302
    %v1305 = vadd.f32 %v1296, %v1302
    %v1306 = vadd.f32 %v1297, %v1302
    %v1307 = vadd.f32 %v1298, %v1302
    %v1308 = vld [vmem:[%s6 + $0xa] sm:$0xf]
    %v1310 = vsel %vm556, %v1308, 0
    %v1313 = vsel %vm64, %v1307, 0
    %1315 = vmatprep.subr.mxu0 0.0
    %1316 = vmatpush1.msra.mxu0 %v1303
    %1317 = vmatprep.subr.mxu0 0.0
    %1318 = vmatpush1.msra.mxu0 %v1304
    %1319 = vmatprep.subr.mxu0 0.0
    %1320 = vmatpush1.msra.mxu0 %v1305
    %1321 = vmatprep.subr.mxu0 0.0
    %1322 = vmatpush1.msra.mxu0 %v1306
    %1323 = vmatprep.subr.mxu0 0.0
    %1324 = vmatpush1.msra.mxu0 %v1313
    %1325 = vmatprep.subr.mxu0 0.0
    %1326 = vmatpush1.msra.mxu0 0.0
    %1327 = vmatprep.subr.mxu0 0.0
    %1328 = vmatpush1.msra.mxu0 0.0
    %1329 = vmatprep.subr.mxu0 0.0
    %1330 = vmatpush1.msra.mxu0 0.0
    %1331 = vmatprep.subr.mxu0 0.0
    %1332 = vmatpush1.msra.mxu0 0.0
    %1333 = vmatprep.subr.mxu0 0.0
    %1334 = vmatpush1.msra.mxu0 0.0
    %1335 = vmatprep.subr.mxu0 0.0
    %1336 = vmatpush1.msra.mxu0 0.0
    %1337 = vmatprep.subr.mxu0 0.0
    %1338 = vmatpush1.msra.mxu0 0.0
    %1339 = vmatprep.subr.mxu0 0.0
    %1340 = vmatpush1.msra.mxu0 0.0
    %1341 = vmatprep.subr.mxu0 0.0
    %1342 = vmatpush1.msra.mxu0 0.0
    %1343 = vmatprep.subr.mxu0 0.0
    %1344 = vmatpush1.msra.mxu0 0.0
    %1345 = vmatprep.subr.mxu0 0.0
    %1346 = vmatpush1.msra.mxu0 0.0
    %1347 = vmatprep.subr.mxu0 0.0
    %1348 = vmatpush1.msra.mxu0 0.0
    %1349 = vmatprep.subr.mxu0 0.0
    %1350 = vmatpush1.msra.mxu0 0.0
    %1351 = vmatprep.subr.mxu0 0.0
    %1352 = vmatpush1.msra.mxu0 0.0
    %1353 = vmatprep.subr.mxu0 0.0
    %1354 = vmatpush1.msra.mxu0 0.0
    %1355 = vmatprep.subr.mxu0 0.0
    %1356 = vmatpush1.msra.mxu0 0.0
    %1357 = vmatprep.subr.mxu0 0.0
    %1358 = vmatpush1.msra.mxu0 0.0
    %1359 = vmatprep.subr.mxu0 0.0
    %1360 = vmatpush1.msra.mxu0 0.0
    %1361 = vmatprep.subr.mxu0 0.0
    %1362 = vmatpush1.msra.mxu0 0.0
    %1363 = vmatprep.subr.mxu0 0.0
    %1364 = vmatpush1.msra.mxu0 0.0
    %1365 = vmatprep.subr.mxu0 0.0
    %1366 = vmatpush1.msra.mxu0 0.0
    %1367 = vmatprep.subr.mxu0 0.0
    %1368 = vmatpush1.msra.mxu0 0.0
    %1369 = vmatprep.subr.mxu0 0.0
    %1370 = vmatpush1.msra.mxu0 0.0
    %1371 = vmatprep.subr.mxu0 0.0
    %1372 = vmatpush1.msra.mxu0 0.0
    %1373 = vmatprep.subr.mxu0 0.0
    %1374 = vmatpush1.msra.mxu0 0.0
    %1375 = vmatprep.subr.mxu0 0.0
    %1376 = vmatpush1.msra.mxu0 0.0
    %1377 = vmatprep.subr.mxu0 0.0
    %1378 = vmatpush1.msra.mxu0 0.0
    %1379 = vmatprep.mubr.f32.mxu0 0.0
    %1380 = vmatmul.mubr.f32.gmra.mrb[0].mxu0 %v1310
    %v1381 = vpop.f32.mrb[0].mxu0
    %v1382 = vadd.f32 0.0, %v1381
    %v1383 = vpop.f32.mrb[0].mxu0
    %1384 = vdwg.mxu0
    %v1385 = vld [vmem:[%s4 + $0x18] sm:$0xff]
    %v1386 = vld [vmem:[%s4 + $0x38] sm:$0xff]
    %v1387 = vld [vmem:[%s4 + $0x58] sm:$0xff]
    %v1388 = vld [vmem:[%s4 + $0x78] sm:$0xff]
    %v1390 = vsel %vm309, %v1382, 0
    %1392 = vmatprep.subr.mxu0 0.0
    %1393 = vmatpush1.msra.mxu0 %v1385
    %1394 = vmatprep.subr.mxu0 0.0
    %1395 = vmatpush1.msra.mxu0 %v1386
    %1396 = vmatprep.subr.mxu0 0.0
    %1397 = vmatpush1.msra.mxu0 %v1387
    %1398 = vmatprep.subr.mxu0 0.0
    %1399 = vmatpush1.msra.mxu0 %v1388
    %1400 = vmatprep.subr.mxu0 0.0
    %1401 = vmatpush1.msra.mxu0 0.0
    %1402 = vmatprep.subr.mxu0 0.0
    %1403 = vmatpush1.msra.mxu0 0.0
    %1404 = vmatprep.subr.mxu0 0.0
    %1405 = vmatpush1.msra.mxu0 0.0
    %1406 = vmatprep.subr.mxu0 0.0
    %1407 = vmatpush1.msra.mxu0 0.0
    %1408 = vmatprep.subr.mxu0 0.0
    %1409 = vmatpush1.msra.mxu0 0.0
    %1410 = vmatprep.subr.mxu0 0.0
    %1411 = vmatpush1.msra.mxu0 0.0
    %1412 = vmatprep.subr.mxu0 0.0
    %1413 = vmatpush1.msra.mxu0 0.0
    %1414 = vmatprep.subr.mxu0 0.0
    %1415 = vmatpush1.msra.mxu0 0.0
    %1416 = vmatprep.subr.mxu0 0.0
    %1417 = vmatpush1.msra.mxu0 0.0
    %1418 = vmatprep.subr.mxu0 0.0
    %1419 = vmatpush1.msra.mxu0 0.0
    %1420 = vmatprep.subr.mxu0 0.0
    %1421 = vmatpush1.msra.mxu0 0.0
    %1422 = vmatprep.subr.mxu0 0.0
    %1423 = vmatpush1.msra.mxu0 0.0
    %1424 = vmatprep.subr.mxu0 0.0
    %1425 = vmatpush1.msra.mxu0 0.0
    %1426 = vmatprep.subr.mxu0 0.0
    %1427 = vmatpush1.msra.mxu0 0.0
    %1428 = vmatprep.subr.mxu0 0.0
    %1429 = vmatpush1.msra.mxu0 0.0
    %1430 = vmatprep.subr.mxu0 0.0
    %1431 = vmatpush1.msra.mxu0 0.0
    %1432 = vmatprep.subr.mxu0 0.0
    %1433 = vmatpush1.msra.mxu0 0.0
    %1434 = vmatprep.subr.mxu0 0.0
    %1435 = vmatpush1.msra.mxu0 0.0
    %1436 = vmatprep.subr.mxu0 0.0
    %1437 = vmatpush1.msra.mxu0 0.0
    %1438 = vmatprep.subr.mxu0 0.0
    %1439 = vmatpush1.msra.mxu0 0.0
    %1440 = vmatprep.subr.mxu0 0.0
    %1441 = vmatpush1.msra.mxu0 0.0
    %1442 = vmatprep.subr.mxu0 0.0
    %1443 = vmatpush1.msra.mxu0 0.0
    %1444 = vmatprep.subr.mxu0 0.0
    %1445 = vmatpush1.msra.mxu0 0.0
    %1446 = vmatprep.subr.mxu0 0.0
    %1447 = vmatpush1.msra.mxu0 0.0
    %1448 = vmatprep.subr.mxu0 0.0
    %1449 = vmatpush1.msra.mxu0 0.0
    %1450 = vmatprep.subr.mxu0 0.0
    %1451 = vmatpush1.msra.mxu0 0.0
    %1452 = vmatprep.subr.mxu0 0.0
    %1453 = vmatpush1.msra.mxu0 0.0
    %1454 = vmatprep.subr.mxu0 0.0
    %1455 = vmatpush1.msra.mxu0 0.0
    %1456 = vmatprep.mubr.f32.mxu0 0.0
    %1457 = vmatmul.mubr.f32.gmra.mrb[0].mxu0 %v1390
    %v1458 = vpop.f32.mrb[0].mxu0
    %v1459 = vadd.f32 0.0, %v1458
    %v1460 = vpop.f32.mrb[0].mxu0
    %1461 = vdwg.mxu0
    %v1462 = vld [vmem:[%s6 + $0x6] sm:$0x1]
    %v1463 = vlaneseq
    %v1464 = vshrl.u32 %v1463, 7
    %v1465 = vsub.s32 0, %v1464
    %v1466 = vrot.slane %v1462, %v1465
    %v1467 = vadd.f32 %v1459, %v1466
    %v1468 = vld [vmem:[%s6 + $0x7] sm:$0x1]
    %v1469 = vlaneseq
    %v1470 = vshrl.u32 %v1469, 7
    %v1471 = vsub.s32 0, %v1470
    %v1472 = vrot.slane %v1468, %v1471
    %1474 = vrot.lane.b32.xlu0 %v1472, 32
    %v1475 = vpop.permute.xlu0 %1474
    %v1477 = vadd.f32 %v1459, %v1475
    %v1479 = vrot.slane %v1477, 2
    %1480 = vrot.lane.b32.xlu0 %v1479, 96
    %v1481 = vpop.permute.xlu0 %1480
    %v1483 = vsel %vm309, %v1467, 0
    %v1485 = vsel %vm309, %v1481, 0
    %1487 = vmatprep.subr.mxu0 0.0
    %1488 = vmatpush1.xpose.msra.mxu0 %v1485
    %1489 = vmatprep.subr.mxu0 0.0
    %1490 = vmatpush1.xpose.msra.mxu0 0.0
    %1491 = vmatprep.subr.mxu0 0.0
    %1492 = vmatpush1.xpose.msra.mxu0 0.0
    %1493 = vmatprep.subr.mxu0 0.0
    %1494 = vmatpush1.xpose.msra.mxu0 0.0
    %1495 = vmatprep.subr.mxu0 0.0
    %1496 = vmatpush1.xpose.msra.mxu0 0.0
    %1497 = vmatprep.subr.mxu0 0.0
    %1498 = vmatpush1.xpose.msra.mxu0 0.0
    %1499 = vmatprep.subr.mxu0 0.0
    %1500 = vmatpush1.xpose.msra.mxu0 0.0
    %1501 = vmatprep.subr.mxu0 0.0
    %1502 = vmatpush1.xpose.msra.mxu0 0.0
    %1503 = vmatprep.subr.mxu0 0.0
    %1504 = vmatpush1.xpose.msra.mxu0 0.0
    %1505 = vmatprep.subr.mxu0 0.0
    %1506 = vmatpush1.xpose.msra.mxu0 0.0
    %1507 = vmatprep.subr.mxu0 0.0
    %1508 = vmatpush1.xpose.msra.mxu0 0.0
    %1509 = vmatprep.subr.mxu0 0.0
    %1510 = vmatpush1.xpose.msra.mxu0 0.0
    %1511 = vmatprep.subr.mxu0 0.0
    %1512 = vmatpush1.xpose.msra.mxu0 0.0
    %1513 = vmatprep.subr.mxu0 0.0
    %1514 = vmatpush1.xpose.msra.mxu0 0.0
    %1515 = vmatprep.subr.mxu0 0.0
    %1516 = vmatpush1.xpose.msra.mxu0 0.0
    %1517 = vmatprep.subr.mxu0 0.0
    %1518 = vmatpush1.xpose.msra.mxu0 0.0
    %1519 = vmatprep.subr.mxu0 0.0
    %1520 = vmatpush1.xpose.msra.mxu0 0.0
    %1521 = vmatprep.subr.mxu0 0.0
    %1522 = vmatpush1.xpose.msra.mxu0 0.0
    %1523 = vmatprep.subr.mxu0 0.0
    %1524 = vmatpush1.xpose.msra.mxu0 0.0
    %1525 = vmatprep.subr.mxu0 0.0
    %1526 = vmatpush1.xpose.msra.mxu0 0.0
    %1527 = vmatprep.subr.mxu0 0.0
    %1528 = vmatpush1.xpose.msra.mxu0 0.0
    %1529 = vmatprep.subr.mxu0 0.0
    %1530 = vmatpush1.xpose.msra.mxu0 0.0
    %1531 = vmatprep.subr.mxu0 0.0
    %1532 = vmatpush1.xpose.msra.mxu0 0.0
    %1533 = vmatprep.subr.mxu0 0.0
    %1534 = vmatpush1.xpose.msra.mxu0 0.0
    %1535 = vmatprep.subr.mxu0 0.0
    %1536 = vmatpush1.xpose.msra.mxu0 0.0
    %1537 = vmatprep.subr.mxu0 0.0
    %1538 = vmatpush1.xpose.msra.mxu0 0.0
    %1539 = vmatprep.subr.mxu0 0.0
    %1540 = vmatpush1.xpose.msra.mxu0 0.0
    %1541 = vmatprep.subr.mxu0 0.0
    %1542 = vmatpush1.xpose.msra.mxu0 0.0
    %1543 = vmatprep.subr.mxu0 0.0
    %1544 = vmatpush1.xpose.msra.mxu0 0.0
    %1545 = vmatprep.subr.mxu0 0.0
    %1546 = vmatpush1.xpose.msra.mxu0 0.0
    %1547 = vmatprep.subr.mxu0 0.0
    %1548 = vmatpush1.xpose.msra.mxu0 0.0
    %1549 = vmatprep.subr.mxu0 0.0
    %1550 = vmatpush1.xpose.msra.mxu0 0.0
    %1551 = vmatprep.mubr.f32.mxu0 0.0
    %1552 = vmatmul.mubr.f32.gmra.mrb[0].mxu0 %v1483
    %v1553 = vpop.f32.mrb[0].mxu0
    %v1554 = vadd.f32 0.0, %v1553
    %v1555 = vpop.f32.mrb[0].mxu0
    %1556 = vdwg.mxu0
    %vm1557 = vcmask 9216
    %1558 = vst.msk [vmem:[#allocation2] sm:$0x3] %vm1557, %v1554
    // Predicated region
    $region30: #{tpu_custom_call.1} parent=1 // pred_check
      _
    $region31: #{tpu_custom_call.1} parent=1 // pred_check_branch
      %1560 = sbr.rel (0) target = $region33
    $region32: #{tpu_custom_call.1} parent=1 // pred_region
      %s1562 = ssub.s32 32, 32
      %1563 = vsyncadd [#allocation3], %s1562
      %s1565 = sshll.u32 [#allocation2], 4
      %s1566 = int_to_ptr.vmem [resolvable:$true] %s1565
      %1568 = dma.vmem_to_hbm [thread:$0]  %s1566, 32, %s7, [#allocation3]
    $region33: #{tpu_custom_call.1} parent=1 // pred_fallthru
      _
    // Predicated region
    $region34: #{tpu_custom_call.1} parent=1 // pred_check
      _
    $region35: #{tpu_custom_call.1} parent=1 // pred_check_branch
      %1570 = sbr.rel (0) target = $region37
    $region36: #{tpu_custom_call.1} parent=1 // pred_region
      %1571 = dma.done [#allocation3], 32
    $region37: #{tpu_custom_call.1} parent=1 // pred_fallthru
      _
    %1572 = vsyncpa [#allocation3], 1

</llo_original>
